<compile_context>
chip_gen: v7x
topology: tpu7x:2x2x1
jax: 0.10.0
libtpu: 0.0.40
codegen_flags: <defaults>
</compile_context>

<pallas_src>
import math
import functools

import jax
import jax.numpy as jnp
from jax.experimental import pallas as pl
from jax.experimental.pallas import tpu as pltpu


def _mhe_kernel(x_ref, wqkv_ref, wp_ref, bp_ref, o_ref, *, num_heads, head_size):
    """Multi-head self-attention encoder for one batch block.

    x_ref:    (BB, T, E)   input tokens for BB batch elements
    wqkv_ref: (E, 3*H*D)   fused [Q heads | K heads | V heads] weights
    wp_ref:   (H, D, E)    output projection, blocked per head
    bp_ref:   (1, E)       output projection bias
    o_ref:    (BB, T, E)   output
    """
    BB, T, E = x_ref.shape
    H, D = num_heads, head_size
    HD = H * D
    scale = 1.0 / math.sqrt(D)

    # ---- Fused QKV projection: one (BB*T, E) @ (E, 3*H*D) MXU op ----------
    x = x_ref[...].reshape(BB * T, E)                     # leading-dim collapse (free)
    qkv = jnp.dot(x, wqkv_ref[...],
                  preferred_element_type=jnp.float32)     # (BB*T, 3*H*D)

    bias = bp_ref[0].astype(jnp.float32)                  # (E,)

    # Static unroll over the batch block (BB is 1 on v7x, B on v5e/v6e).
    for b in range(BB):
        qkv_b = qkv[b * T:(b + 1) * T]                    # (T, 3*H*D)
        q = qkv_b[:, 0 * HD:1 * HD].reshape(T, H, D)      # (T, H, D)
        k = qkv_b[:, 1 * HD:2 * HD].reshape(T, H, D)
        v = qkv_b[:, 2 * HD:3 * HD].reshape(T, H, D)

        # Scaled dot-product attention, batched over heads (encoder: no mask).
        s = jnp.einsum('qhd,khd->hqk', q, k,
                       preferred_element_type=jnp.float32) * scale    # (H, T, T)

        # Numerically stable softmax; reciprocal runs on the (otherwise idle) EUP.
        m = jnp.max(s, axis=-1, keepdims=True)
        e = jnp.exp(s - m)
        p = e * pl.reciprocal(jnp.sum(e, axis=-1, keepdims=True), approx=True)

        ctx = jnp.einsum('hqk,khd->hqd', p, v,
                         preferred_element_type=jnp.float32)          # (H, T, D)

        # Output projection folded over heads: bias + sum_h ctx[h] @ Wp[h]
        # (no head-concat transpose / relayout).
        out = bias + jnp.dot(ctx[0], wp_ref[0],
                             preferred_element_type=jnp.float32)
        for h in range(1, H):
            out = out + jnp.dot(ctx[h], wp_ref[h],
                                preferred_element_type=jnp.float32)

        o_ref[b] = out.astype(o_ref.dtype)


def _default_batch_block(B):
    """Batch elements processed per grid step.

    v7x has 2 TensorCores/chip -> keep one batch element per grid step and let
    dimension_semantics=("parallel",) shard the batch across cores.
    Single-TC chips (v5e/v6e) -> one grid step for the whole batch.
    """
    try:
        kind = jax.devices()[0].device_kind.lower()
    except Exception:
        kind = ""
    return 1 if "v7" in kind else B


def multi_head_encoder(x, wq, wk, wv, wp, bp, *, batch_block=None):
    """x: (B,T,E); wq/wk/wv: (H,E,D); wp: (H*D,E); bp: (E,). Returns (B,T,E)."""
    B, T, E = x.shape
    H, _, D = wq.shape

    if batch_block is None:
        batch_block = _default_batch_block(B)
    BB = max(1, min(B, int(batch_block)))
    if B % BB != 0:
        BB = 1
    grid = (B // BB,)

    # Fuse the 3*H per-head projections into a single (E, 3*H*D) weight.
    # Column layout: [Q head0..H-1 | K head0..H-1 | V head0..H-1], D-contiguous.
    def _flat(w):                        # (H, E, D) -> (E, H*D)
        return jnp.transpose(w, (1, 0, 2)).reshape(E, H * D)

    wqkv = jnp.concatenate([_flat(wq), _flat(wk), _flat(wv)], axis=1)  # (E, 3*H*D)
    wp_hde = wp.reshape(H, D, E)         # head-blocked output projection weight
    bp2 = bp.reshape(1, E)

    kernel = functools.partial(_mhe_kernel, num_heads=H, head_size=D)
    return pl.pallas_call(
        kernel,
        out_shape=jax.ShapeDtypeStruct((B, T, E), x.dtype),
        grid=grid,
        in_specs=[
            pl.BlockSpec((BB, T, E), lambda i: (i, 0, 0)),       # x (batch block)
            pl.BlockSpec((E, 3 * H * D), lambda i: (0, 0)),      # fused QKV weight
            pl.BlockSpec((H, D, E), lambda i: (0, 0, 0)),        # proj weight (per head)
            pl.BlockSpec((1, E), lambda i: (0, 0)),              # proj bias
        ],
        out_specs=pl.BlockSpec((BB, T, E), lambda i: (i, 0, 0)),
        compiler_params=pltpu.CompilerParams(
            dimension_semantics=("parallel",)),
    )(x, wqkv, wp_hde, bp2)


def multi_head_encoder_ref(x, wq, wk, wv, wp, bp):
    """Pure-JAX reference mirroring the PyTorch forward (eval mode)."""
    D = wq.shape[-1]
    q = jnp.einsum('bte,hed->bhtd', x, wq)
    k = jnp.einsum('bte,hed->bhtd', x, wk)
    v = jnp.einsum('bte,hed->bhtd', x, wv)
    scores = jnp.einsum('bhqd,bhkd->bhqk', q, k) / math.sqrt(D)
    probs = jax.nn.softmax(scores, axis=-1)
    attn = jnp.einsum('bhqk,bhkd->bhqd', probs, v)            # (B,H,T,D)
    B, H, T, _ = attn.shape
    cat = jnp.transpose(attn, (0, 2, 1, 3)).reshape(B, T, H * D)
    return cat @ wp + bp


if __name__ == "__main__":
    # Module hyperparameters (small, consistent with the forward pass).
    B, T, E = 2, 8, 32          # batch, seq (== block_size), embedding_size
    H, D = 4, 8                 # num_heads, head_size

    key = jax.random.PRNGKey(0)
    kx, kq, kk, kv, kp, kb = jax.random.split(key, 6)

    x = jax.random.normal(kx, (B, T, E), dtype=jnp.float32)
    # Parameters stored as (E, D) per head (already transposed w.r.t.
    # nn.Linear's (out, in) layout; math is x @ W).
    wq = jax.random.normal(kq, (H, E, D), dtype=jnp.float32) * 0.1
    wk = jax.random.normal(kk, (H, E, D), dtype=jnp.float32) * 0.1
    wv = jax.random.normal(kv, (H, E, D), dtype=jnp.float32) * 0.1
    wp = jax.random.normal(kp, (H * D, E), dtype=jnp.float32) * 0.1
    bp = jax.random.normal(kb, (E,), dtype=jnp.float32) * 0.1

    out = multi_head_encoder(x, wq, wk, wv, wp, bp)
    out = jax.block_until_ready(out)

    ref = multi_head_encoder_ref(x, wq, wk, wv, wp, bp)
    assert out.shape == (B, T, E)
    # Tolerance allows for the EUP approximate-reciprocal softmax denominator;
    # a layout/fusion bug would produce O(1) errors and still fail this check.
    assert jnp.allclose(out, ref, atol=2e-3, rtol=2e-3), "mismatch vs JAX reference"

    print("KERNEL_OK")
</pallas_src>

<mosaic_0001>
module attributes {stable_mosaic.version = 11 : i64} {
  func.func @_mhe_kernel(%arg0: i32, %arg1: memref<2x8x32xf32, #tpu.memory_space<vmem>>, %arg2: memref<32x96xf32, #tpu.memory_space<vmem>>, %arg3: memref<4x8x32xf32, #tpu.memory_space<vmem>>, %arg4: memref<1x32xf32, #tpu.memory_space<vmem>>, %arg5: memref<2x8x32xf32, #tpu.memory_space<vmem>>) attributes {dimension_semantics = [#tpu.dimension_semantics<parallel>], iteration_bounds = array<i64: 1>, scalar_prefetch = 0 : i64, scratch_operands = 0 : i64, tpu.core_type = #tpu.core_type<tc>, window_params = [{transform_indices = @transform_0, window_bounds = array<i64: 2, 8, 32>}, {pipeline_mode = #tpu.pipeline_mode<synchronous>, transform_indices = @transform_1, window_bounds = array<i64: 32, 96>}, {pipeline_mode = #tpu.pipeline_mode<synchronous>, transform_indices = @transform_2, window_bounds = array<i64: 4, 8, 32>}, {pipeline_mode = #tpu.pipeline_mode<synchronous>, transform_indices = @transform_3, window_bounds = array<i64: 1, 32>}, {transform_indices = @transform_4, window_bounds = array<i64: 2, 8, 32>}]} {
    %c0 = arith.constant 0 : index
    %c0_0 = arith.constant 0 : index
    %c0_1 = arith.constant 0 : index
    %0 = vector.load %arg1[%c0, %c0_0, %c0_1] : memref<2x8x32xf32, #tpu.memory_space<vmem>>, vector<2x8x32xf32>
    %1 = vector.shape_cast %0 : vector<2x8x32xf32> to vector<16x32xf32>
    %c0_2 = arith.constant 0 : index
    %c0_3 = arith.constant 0 : index
    %2 = vector.load %arg2[%c0_2, %c0_3] : memref<32x96xf32, #tpu.memory_space<vmem>>, vector<32x96xf32>
    %cst = arith.constant dense<0.000000e+00> : vector<16x96xf32>
    %3 = tpu.matmul %1, %2, %cst {dimension_numbers = #tpu.dot_dimension_numbers<[1], [0], [0], [1], [0, 0, 1, 1], [], []>} : vector<16x32xf32>, vector<32x96xf32>, vector<16x96xf32> -> vector<16x96xf32>
    %c0_4 = arith.constant 0 : index
    %c0_5 = arith.constant 0 : index
    %4 = vector.load %arg4[%c0_4, %c0_5] : memref<1x32xf32, #tpu.memory_space<vmem>>, vector<1x32xf32>
    %5 = vector.shape_cast %4 : vector<1x32xf32> to vector<32xf32>
    %6 = vector.extract_strided_slice %3 {offsets = [0, 0], sizes = [8, 96], strides = [1, 1]} : vector<16x96xf32> to vector<8x96xf32>
    %7 = vector.extract_strided_slice %6 {offsets = [0, 0], sizes = [8, 32], strides = [1, 1]} : vector<8x96xf32> to vector<8x32xf32>
    %8 = vector.shape_cast %7 : vector<8x32xf32> to vector<8x4x8xf32>
    %9 = vector.extract_strided_slice %6 {offsets = [0, 32], sizes = [8, 32], strides = [1, 1]} : vector<8x96xf32> to vector<8x32xf32>
    %10 = vector.shape_cast %9 : vector<8x32xf32> to vector<8x4x8xf32>
    %11 = vector.extract_strided_slice %6 {offsets = [0, 64], sizes = [8, 32], strides = [1, 1]} : vector<8x96xf32> to vector<8x32xf32>
    %12 = vector.shape_cast %11 : vector<8x32xf32> to vector<8x4x8xf32>
    "tpu.trace_start"() <{level = 10 : i32, message = "qhd,khd->hqk"}> : () -> ()
    %cst_6 = arith.constant dense<0.000000e+00> : vector<4x8x8xf32>
    %13 = tpu.matmul %8, %10, %cst_6 {dimension_numbers = #tpu.dot_dimension_numbers<[2], [2], [0], [0], [0, 1, 0, 0, 1, 0], [1], [1]>} : vector<8x4x8xf32>, vector<8x4x8xf32>, vector<4x8x8xf32> -> vector<4x8x8xf32>
    "tpu.trace_stop"() : () -> ()
    %cst_7 = arith.constant 0.353553385 : f32
    %14 = vector.broadcast %cst_7 : f32 to vector<4x8x8xf32>
    %15 = arith.mulf %13, %14 : vector<4x8x8xf32>
    %cst_8 = arith.constant dense<0xFF800000> : vector<4x8xf32>
    %16 = vector.multi_reduction <maximumf>, %15, %cst_8 [2] : vector<4x8x8xf32> to vector<4x8xf32>
    %17 = vector.shape_cast %16 : vector<4x8xf32> to vector<4x8x1xf32>
    %18 = vector.broadcast %17 : vector<4x8x1xf32> to vector<4x8x8xf32>
    %19 = arith.subf %15, %18 : vector<4x8x8xf32>
    %20 = math.exp %19 : vector<4x8x8xf32>
    %cst_9 = arith.constant dense<0.000000e+00> : vector<4x8xf32>
    %21 = vector.multi_reduction <add>, %20, %cst_9 [2] : vector<4x8x8xf32> to vector<4x8xf32>
    %22 = vector.shape_cast %21 : vector<4x8xf32> to vector<4x8x1xf32>
    %23 = tpu.reciprocal %22 {approx = true} : vector<4x8x1xf32> -> vector<4x8x1xf32>
    %24 = vector.broadcast %23 : vector<4x8x1xf32> to vector<4x8x8xf32>
    %25 = arith.mulf %20, %24 : vector<4x8x8xf32>
    "tpu.trace_start"() <{level = 10 : i32, message = "hqk,khd->hqd"}> : () -> ()
    %cst_10 = arith.constant dense<0.000000e+00> : vector<4x8x8xf32>
    %26 = tpu.matmul %25, %12, %cst_10 {dimension_numbers = #tpu.dot_dimension_numbers<[2], [0], [1], [2], [0, 0, 0, 1, 1, 2], [0], [1]>} : vector<4x8x8xf32>, vector<8x4x8xf32>, vector<4x8x8xf32> -> vector<4x8x8xf32>
    "tpu.trace_stop"() : () -> ()
    %27 = vector.extract_strided_slice %26 {offsets = [0, 0, 0], sizes = [1, 8, 8], strides = [1, 1, 1]} : vector<4x8x8xf32> to vector<1x8x8xf32>
    %28 = vector.shape_cast %27 : vector<1x8x8xf32> to vector<8x8xf32>
    %c0_11 = arith.constant 0 : index
    %c0_12 = arith.constant 0 : index
    %c0_13 = arith.constant 0 : index
    %29 = vector.load %arg3[%c0_11, %c0_12, %c0_13] : memref<4x8x32xf32, #tpu.memory_space<vmem>>, vector<1x8x32xf32>
    %30 = vector.shape_cast %29 : vector<1x8x32xf32> to vector<8x32xf32>
    %cst_14 = arith.constant dense<0.000000e+00> : vector<8x32xf32>
    %31 = tpu.matmul %28, %30, %cst_14 {dimension_numbers = #tpu.dot_dimension_numbers<[1], [0], [0], [1], [0, 0, 1, 1], [], []>} : vector<8x8xf32>, vector<8x32xf32>, vector<8x32xf32> -> vector<8x32xf32>
    %32 = vector.shape_cast %5 : vector<32xf32> to vector<1x32xf32>
    %33 = vector.broadcast %32 : vector<1x32xf32> to vector<8x32xf32>
    %34 = arith.addf %33, %31 : vector<8x32xf32>
    %35 = vector.extract_strided_slice %26 {offsets = [1, 0, 0], sizes = [1, 8, 8], strides = [1, 1, 1]} : vector<4x8x8xf32> to vector<1x8x8xf32>
    %36 = vector.shape_cast %35 : vector<1x8x8xf32> to vector<8x8xf32>
    %c1 = arith.constant 1 : index
    %c0_15 = arith.constant 0 : index
    %c0_16 = arith.constant 0 : index
    %37 = vector.load %arg3[%c1, %c0_15, %c0_16] : memref<4x8x32xf32, #tpu.memory_space<vmem>>, vector<1x8x32xf32>
    %38 = vector.shape_cast %37 : vector<1x8x32xf32> to vector<8x32xf32>
    %cst_17 = arith.constant dense<0.000000e+00> : vector<8x32xf32>
    %39 = tpu.matmul %36, %38, %cst_17 {dimension_numbers = #tpu.dot_dimension_numbers<[1], [0], [0], [1], [0, 0, 1, 1], [], []>} : vector<8x8xf32>, vector<8x32xf32>, vector<8x32xf32> -> vector<8x32xf32>
    %40 = arith.addf %34, %39 : vector<8x32xf32>
    %41 = vector.extract_strided_slice %26 {offsets = [2, 0, 0], sizes = [1, 8, 8], strides = [1, 1, 1]} : vector<4x8x8xf32> to vector<1x8x8xf32>
    %42 = vector.shape_cast %41 : vector<1x8x8xf32> to vector<8x8xf32>
    %c2 = arith.constant 2 : index
    %c0_18 = arith.constant 0 : index
    %c0_19 = arith.constant 0 : index
    %43 = vector.load %arg3[%c2, %c0_18, %c0_19] : memref<4x8x32xf32, #tpu.memory_space<vmem>>, vector<1x8x32xf32>
    %44 = vector.shape_cast %43 : vector<1x8x32xf32> to vector<8x32xf32>
    %cst_20 = arith.constant dense<0.000000e+00> : vector<8x32xf32>
    %45 = tpu.matmul %42, %44, %cst_20 {dimension_numbers = #tpu.dot_dimension_numbers<[1], [0], [0], [1], [0, 0, 1, 1], [], []>} : vector<8x8xf32>, vector<8x32xf32>, vector<8x32xf32> -> vector<8x32xf32>
    %46 = arith.addf %40, %45 : vector<8x32xf32>
    %47 = vector.extract_strided_slice %26 {offsets = [3, 0, 0], sizes = [1, 8, 8], strides = [1, 1, 1]} : vector<4x8x8xf32> to vector<1x8x8xf32>
    %48 = vector.shape_cast %47 : vector<1x8x8xf32> to vector<8x8xf32>
    %c3 = arith.constant 3 : index
    %c0_21 = arith.constant 0 : index
    %c0_22 = arith.constant 0 : index
    %49 = vector.load %arg3[%c3, %c0_21, %c0_22] : memref<4x8x32xf32, #tpu.memory_space<vmem>>, vector<1x8x32xf32>
    %50 = vector.shape_cast %49 : vector<1x8x32xf32> to vector<8x32xf32>
    %cst_23 = arith.constant dense<0.000000e+00> : vector<8x32xf32>
    %51 = tpu.matmul %48, %50, %cst_23 {dimension_numbers = #tpu.dot_dimension_numbers<[1], [0], [0], [1], [0, 0, 1, 1], [], []>} : vector<8x8xf32>, vector<8x32xf32>, vector<8x32xf32> -> vector<8x32xf32>
    %52 = arith.addf %46, %51 : vector<8x32xf32>
    %c0_24 = arith.constant 0 : index
    %c0_25 = arith.constant 0 : index
    %c0_26 = arith.constant 0 : index
    %53 = vector.load %arg5[%c0_24, %c0_25, %c0_26] : memref<2x8x32xf32, #tpu.memory_space<vmem>>, vector<1x8x32xf32>
    %54 = vector.shape_cast %53 : vector<1x8x32xf32> to vector<8x32xf32>
    %55 = vector.shape_cast %52 : vector<8x32xf32> to vector<1x8x32xf32>
    tpu.vector_store %arg5[%c0_24, %c0_25, %c0_26], %55 {strides = array<i32>} : memref<2x8x32xf32, #tpu.memory_space<vmem>>, vector<1x8x32xf32>,
    %56 = vector.extract_strided_slice %3 {offsets = [8, 0], sizes = [8, 96], strides = [1, 1]} : vector<16x96xf32> to vector<8x96xf32>
    %57 = vector.extract_strided_slice %56 {offsets = [0, 0], sizes = [8, 32], strides = [1, 1]} : vector<8x96xf32> to vector<8x32xf32>
    %58 = vector.shape_cast %57 : vector<8x32xf32> to vector<8x4x8xf32>
    %59 = vector.extract_strided_slice %56 {offsets = [0, 32], sizes = [8, 32], strides = [1, 1]} : vector<8x96xf32> to vector<8x32xf32>
    %60 = vector.shape_cast %59 : vector<8x32xf32> to vector<8x4x8xf32>
    %61 = vector.extract_strided_slice %56 {offsets = [0, 64], sizes = [8, 32], strides = [1, 1]} : vector<8x96xf32> to vector<8x32xf32>
    %62 = vector.shape_cast %61 : vector<8x32xf32> to vector<8x4x8xf32>
    "tpu.trace_start"() <{level = 10 : i32, message = "qhd,khd->hqk"}> : () -> ()
    %cst_27 = arith.constant dense<0.000000e+00> : vector<4x8x8xf32>
    %63 = tpu.matmul %58, %60, %cst_27 {dimension_numbers = #tpu.dot_dimension_numbers<[2], [2], [0], [0], [0, 1, 0, 0, 1, 0], [1], [1]>} : vector<8x4x8xf32>, vector<8x4x8xf32>, vector<4x8x8xf32> -> vector<4x8x8xf32>
    "tpu.trace_stop"() : () -> ()
    %cst_28 = arith.constant 0.353553385 : f32
    %64 = vector.broadcast %cst_28 : f32 to vector<4x8x8xf32>
    %65 = arith.mulf %63, %64 : vector<4x8x8xf32>
    %cst_29 = arith.constant dense<0xFF800000> : vector<4x8xf32>
    %66 = vector.multi_reduction <maximumf>, %65, %cst_29 [2] : vector<4x8x8xf32> to vector<4x8xf32>
    %67 = vector.shape_cast %66 : vector<4x8xf32> to vector<4x8x1xf32>
    %68 = vector.broadcast %67 : vector<4x8x1xf32> to vector<4x8x8xf32>
    %69 = arith.subf %65, %68 : vector<4x8x8xf32>
    %70 = math.exp %69 : vector<4x8x8xf32>
    %cst_30 = arith.constant dense<0.000000e+00> : vector<4x8xf32>
    %71 = vector.multi_reduction <add>, %70, %cst_30 [2] : vector<4x8x8xf32> to vector<4x8xf32>
    %72 = vector.shape_cast %71 : vector<4x8xf32> to vector<4x8x1xf32>
    %73 = tpu.reciprocal %72 {approx = true} : vector<4x8x1xf32> -> vector<4x8x1xf32>
    %74 = vector.broadcast %73 : vector<4x8x1xf32> to vector<4x8x8xf32>
    %75 = arith.mulf %70, %74 : vector<4x8x8xf32>
    "tpu.trace_start"() <{level = 10 : i32, message = "hqk,khd->hqd"}> : () -> ()
    %cst_31 = arith.constant dense<0.000000e+00> : vector<4x8x8xf32>
    %76 = tpu.matmul %75, %62, %cst_31 {dimension_numbers = #tpu.dot_dimension_numbers<[2], [0], [1], [2], [0, 0, 0, 1, 1, 2], [0], [1]>} : vector<4x8x8xf32>, vector<8x4x8xf32>, vector<4x8x8xf32> -> vector<4x8x8xf32>
    "tpu.trace_stop"() : () -> ()
    %77 = vector.extract_strided_slice %76 {offsets = [0, 0, 0], sizes = [1, 8, 8], strides = [1, 1, 1]} : vector<4x8x8xf32> to vector<1x8x8xf32>
    %78 = vector.shape_cast %77 : vector<1x8x8xf32> to vector<8x8xf32>
    %c0_32 = arith.constant 0 : index
    %c0_33 = arith.constant 0 : index
    %c0_34 = arith.constant 0 : index
    %79 = vector.load %arg3[%c0_32, %c0_33, %c0_34] : memref<4x8x32xf32, #tpu.memory_space<vmem>>, vector<1x8x32xf32>
    %80 = vector.shape_cast %79 : vector<1x8x32xf32> to vector<8x32xf32>
    %cst_35 = arith.constant dense<0.000000e+00> : vector<8x32xf32>
    %81 = tpu.matmul %78, %80, %cst_35 {dimension_numbers = #tpu.dot_dimension_numbers<[1], [0], [0], [1], [0, 0, 1, 1], [], []>} : vector<8x8xf32>, vector<8x32xf32>, vector<8x32xf32> -> vector<8x32xf32>
    %82 = vector.shape_cast %5 : vector<32xf32> to vector<1x32xf32>
    %83 = vector.broadcast %82 : vector<1x32xf32> to vector<8x32xf32>
    %84 = arith.addf %83, %81 : vector<8x32xf32>
    %85 = vector.extract_strided_slice %76 {offsets = [1, 0, 0], sizes = [1, 8, 8], strides = [1, 1, 1]} : vector<4x8x8xf32> to vector<1x8x8xf32>
    %86 = vector.shape_cast %85 : vector<1x8x8xf32> to vector<8x8xf32>
    %c1_36 = arith.constant 1 : index
    %c0_37 = arith.constant 0 : index
    %c0_38 = arith.constant 0 : index
    %87 = vector.load %arg3[%c1_36, %c0_37, %c0_38] : memref<4x8x32xf32, #tpu.memory_space<vmem>>, vector<1x8x32xf32>
    %88 = vector.shape_cast %87 : vector<1x8x32xf32> to vector<8x32xf32>
    %cst_39 = arith.constant dense<0.000000e+00> : vector<8x32xf32>
    %89 = tpu.matmul %86, %88, %cst_39 {dimension_numbers = #tpu.dot_dimension_numbers<[1], [0], [0], [1], [0, 0, 1, 1], [], []>} : vector<8x8xf32>, vector<8x32xf32>, vector<8x32xf32> -> vector<8x32xf32>
    %90 = arith.addf %84, %89 : vector<8x32xf32>
    %91 = vector.extract_strided_slice %76 {offsets = [2, 0, 0], sizes = [1, 8, 8], strides = [1, 1, 1]} : vector<4x8x8xf32> to vector<1x8x8xf32>
    %92 = vector.shape_cast %91 : vector<1x8x8xf32> to vector<8x8xf32>
    %c2_40 = arith.constant 2 : index
    %c0_41 = arith.constant 0 : index
    %c0_42 = arith.constant 0 : index
    %93 = vector.load %arg3[%c2_40, %c0_41, %c0_42] : memref<4x8x32xf32, #tpu.memory_space<vmem>>, vector<1x8x32xf32>
    %94 = vector.shape_cast %93 : vector<1x8x32xf32> to vector<8x32xf32>
    %cst_43 = arith.constant dense<0.000000e+00> : vector<8x32xf32>
    %95 = tpu.matmul %92, %94, %cst_43 {dimension_numbers = #tpu.dot_dimension_numbers<[1], [0], [0], [1], [0, 0, 1, 1], [], []>} : vector<8x8xf32>, vector<8x32xf32>, vector<8x32xf32> -> vector<8x32xf32>
    %96 = arith.addf %90, %95 : vector<8x32xf32>
    %97 = vector.extract_strided_slice %76 {offsets = [3, 0, 0], sizes = [1, 8, 8], strides = [1, 1, 1]} : vector<4x8x8xf32> to vector<1x8x8xf32>
    %98 = vector.shape_cast %97 : vector<1x8x8xf32> to vector<8x8xf32>
    %c3_44 = arith.constant 3 : index
    %c0_45 = arith.constant 0 : index
    %c0_46 = arith.constant 0 : index
    %99 = vector.load %arg3[%c3_44, %c0_45, %c0_46] : memref<4x8x32xf32, #tpu.memory_space<vmem>>, vector<1x8x32xf32>
    %100 = vector.shape_cast %99 : vector<1x8x32xf32> to vector<8x32xf32>
    %cst_47 = arith.constant dense<0.000000e+00> : vector<8x32xf32>
    %101 = tpu.matmul %98, %100, %cst_47 {dimension_numbers = #tpu.dot_dimension_numbers<[1], [0], [0], [1], [0, 0, 1, 1], [], []>} : vector<8x8xf32>, vector<8x32xf32>, vector<8x32xf32> -> vector<8x32xf32>
    %102 = arith.addf %96, %101 : vector<8x32xf32>
    %c1_48 = arith.constant 1 : index
    %c0_49 = arith.constant 0 : index
    %c0_50 = arith.constant 0 : index
    %103 = vector.load %arg5[%c1_48, %c0_49, %c0_50] : memref<2x8x32xf32, #tpu.memory_space<vmem>>, vector<1x8x32xf32>
    %104 = vector.shape_cast %103 : vector<1x8x32xf32> to vector<8x32xf32>
    %105 = vector.shape_cast %102 : vector<8x32xf32> to vector<1x8x32xf32>
    tpu.vector_store %arg5[%c1_48, %c0_49, %c0_50], %105 {strides = array<i32>} : memref<2x8x32xf32, #tpu.memory_space<vmem>>, vector<1x8x32xf32>,
    return
  }
  func.func @transform_0(%arg0: i32) -> (i32, i32, i32) {
    %c0_i32 = arith.constant 0 : i32
    %c0_i32_0 = arith.constant 0 : i32
    %c0_i32_1 = arith.constant 0 : i32
    return %arg0, %c0_i32, %c0_i32_0 : i32, i32, i32
  }
  func.func @transform_1(%arg0: i32) -> (i32, i32) {
    %c0_i32 = arith.constant 0 : i32
    %c0_i32_0 = arith.constant 0 : i32
    %c0_i32_1 = arith.constant 0 : i32
    return %c0_i32, %c0_i32_0 : i32, i32
  }
  func.func @transform_2(%arg0: i32) -> (i32, i32, i32) {
    %c0_i32 = arith.constant 0 : i32
    %c0_i32_0 = arith.constant 0 : i32
    %c0_i32_1 = arith.constant 0 : i32
    %c0_i32_2 = arith.constant 0 : i32
    return %c0_i32, %c0_i32_0, %c0_i32_1 : i32, i32, i32
  }
  func.func @transform_3(%arg0: i32) -> (i32, i32) {
    %c0_i32 = arith.constant 0 : i32
    %c0_i32_0 = arith.constant 0 : i32
    %c0_i32_1 = arith.constant 0 : i32
    return %c0_i32, %c0_i32_0 : i32, i32
  }
  func.func @transform_4(%arg0: i32) -> (i32, i32, i32) {
    %c0_i32 = arith.constant 0 : i32
    %c0_i32_0 = arith.constant 0 : i32
    %c0_i32_1 = arith.constant 0 : i32
    return %arg0, %c0_i32, %c0_i32_0 : i32, i32, i32
  }
}

</mosaic_0001>

<llo_original>
// kernel: tpu_custom_call.1
$region0: #{tpu_custom_call.1}
  #allocation0 [shape = 'u32[]', space=smem, size = 0x4, offset = 0x4, fixed_abs, tag = 'smem constant byte address 0x4 - core index']
  #allocation1 [shape = 'u32[144,128]{1,0:T(1,128)}', space=vmem, size = 0x12000, scoped, tag = 'internal scratch']
  %s0 = inlined_call_operand.hbm [shape: f32[2,8,32], index: 0, kind: input, shape index: {}]
  %s1 = inlined_call_operand.hbm [shape: f32[32,96], index: 1, kind: input, shape index: {}]
  %s2 = inlined_call_operand.hbm [shape: f32[4,8,32], index: 2, kind: input, shape index: {}]
  %s3 = inlined_call_operand.vmem [shape: f32[1,32], index: 3, kind: input, shape index: {}]
  %s4 = inlined_call_operand.hbm [shape: f32[2,8,32], index: 4, kind: output, shape index: {}]
  %s5 = sld [smem:[#allocation0]]
  $region38: #{tpu_custom_call.1} parent=0
    _
  %s7 = ssub.s32 1, %s5
  %s8 = scalar_select 0, %s7, %s5
  $region1: #{tpu_custom_call.1} parent=0
    #allocation2 [shape = 'u8[8192]{0}', space=vmem, size = 0x2000, scoped, tag = 'input window, operand 0, single buffered']
    #allocation3 [shape = 's32[1]{0}', space=sflag, size = 0x4, scoped, tag = 'scoped memory for tpu_custom_call.1']
    #allocation4 [shape = 's32[1]{0}', space=sflag, size = 0x4, scoped, tag = 'scoped memory for tpu_custom_call.1']
    #allocation5 [shape = 'u8[16384]{0}', space=vmem, size = 0x4000, scoped, tag = 'input window, operand 1, single buffered']
    #allocation6 [shape = 's32[1]{0}', space=sflag, size = 0x4, scoped, tag = 'scoped memory for tpu_custom_call.1']
    #allocation7 [shape = 'u8[16384]{0}', space=vmem, size = 0x4000, scoped, tag = 'input window, operand 2, single buffered']
    #allocation8 [shape = 'u8[8192]{0}', space=vmem, size = 0x2000, scoped, tag = 'output window, operand 0, single buffered']
    %9 = vsyncpa [#allocation3], 0
    %10 = vsyncpa [#allocation6], 0
    %11 = vsyncpa [#allocation4], 0
    // Predicated region
    $region2: #{tpu_custom_call.1} parent=1 // pred_check
      _
    $region3: #{tpu_custom_call.1} parent=1 // pred_check_branch
      %13 = sbr.rel (0) target = $region5
    $region4: #{tpu_custom_call.1} parent=1 // pred_region
      %s15 = ssub.s32 256, 256
      %16 = vsyncadd [#allocation3], %s15
      %s17 = sshll.u32 [#allocation2], 4
      %s18 = int_to_ptr.vmem [resolvable:$true] %s17
      %23 = dma.hbm_to_vmem [thread:$0]  %s0, 256, %s18, [#allocation3], 128, 128, 8
    $region5: #{tpu_custom_call.1} parent=1 // pred_fallthru
      _
    // Predicated region
    $region6: #{tpu_custom_call.1} parent=1 // pred_check
      _
    $region7: #{tpu_custom_call.1} parent=1 // pred_check_branch
      %25 = sbr.rel (0) target = $region9
    $region8: #{tpu_custom_call.1} parent=1 // pred_region
      %s27 = ssub.s32 512, 512
      %28 = vsyncadd [#allocation6], %s27
      %s29 = sshll.u32 [#allocation5], 4
      %s30 = int_to_ptr.vmem [resolvable:$true] %s29
      %35 = dma.hbm_to_vmem [thread:$0]  %s1, 512, %s30, [#allocation6], 128, 128, 8
    $region9: #{tpu_custom_call.1} parent=1 // pred_fallthru
      _
    // Predicated region
    $region10: #{tpu_custom_call.1} parent=1 // pred_check
      _
    $region11: #{tpu_custom_call.1} parent=1 // pred_check_branch
      %37 = sbr.rel (0) target = $region13
    $region12: #{tpu_custom_call.1} parent=1 // pred_region
      %s39 = ssub.s32 512, 512
      %40 = vsyncadd [#allocation6], %s39
      %s41 = sshll.u32 [#allocation7], 4
      %s42 = int_to_ptr.vmem [resolvable:$true] %s41
      %47 = dma.hbm_to_vmem [thread:$0]  %s2, 512, %s42, [#allocation6], 128, 128, 8
    $region13: #{tpu_custom_call.1} parent=1 // pred_fallthru
      _
    // Predicated region
    $region14: #{tpu_custom_call.1} parent=1 // pred_check
      _
    $region15: #{tpu_custom_call.1} parent=1 // pred_check_branch
      %49 = sbr.rel (0) target = $region17
    $region16: #{tpu_custom_call.1} parent=1 // pred_region
      _
    $region17: #{tpu_custom_call.1} parent=1 // pred_fallthru
      _
    // Predicated region
    $region18: #{tpu_custom_call.1} parent=1 // pred_check
      _
    $region19: #{tpu_custom_call.1} parent=1 // pred_check_branch
      %51 = sbr.rel (0) target = $region21
    $region20: #{tpu_custom_call.1} parent=1 // pred_region
      %52 = dma.done [#allocation3], 256
    $region21: #{tpu_custom_call.1} parent=1 // pred_fallthru
      _
    // Predicated region
    $region22: #{tpu_custom_call.1} parent=1 // pred_check
      _
    $region23: #{tpu_custom_call.1} parent=1 // pred_check_branch
      %54 = sbr.rel (0) target = $region25
    $region24: #{tpu_custom_call.1} parent=1 // pred_region
      %55 = dma.done [#allocation6], 512
    $region25: #{tpu_custom_call.1} parent=1 // pred_fallthru
      _
    // Predicated region
    $region26: #{tpu_custom_call.1} parent=1 // pred_check
      _
    $region27: #{tpu_custom_call.1} parent=1 // pred_check_branch
      %57 = sbr.rel (0) target = $region29
    $region28: #{tpu_custom_call.1} parent=1 // pred_region
      %58 = dma.done [#allocation6], 512
    $region29: #{tpu_custom_call.1} parent=1 // pred_fallthru
      _
    %v59 = vld [vmem:[#allocation2] sm:$0xff]
    %v60 = vld [vmem:[#allocation2 + $0x8] sm:$0xff]
    %v61 = vld [vmem:[#allocation5] sm:$0xff]
    %v62 = vld [vmem:[#allocation5 + $0x8] sm:$0xff]
    %v63 = vld [vmem:[#allocation5 + $0x10] sm:$0xff]
    %v64 = vld [vmem:[#allocation5 + $0x18] sm:$0xff]
    %vm65 = vcmask 261120
    %v67 = vsel %vm65, %v59, 0
    %v70 = vsel %vm65, %v60, 0
    %72 = vmatprep.subr.mxu0 0.0
    %73 = vmatpush1.msra.mxu0 %v61
    %74 = vmatprep.subr.mxu0 0.0
    %75 = vmatpush1.msra.mxu0 %v62
    %76 = vmatprep.subr.mxu0 0.0
    %77 = vmatpush1.msra.mxu0 %v63
    %78 = vmatprep.subr.mxu0 0.0
    %79 = vmatpush1.msra.mxu0 %v64
    %80 = vmatprep.subr.mxu0 0.0
    %81 = vmatpush1.msra.mxu0 0.0
    %82 = vmatprep.subr.mxu0 0.0
    %83 = vmatpush1.msra.mxu0 0.0
    %84 = vmatprep.subr.mxu0 0.0
    %85 = vmatpush1.msra.mxu0 0.0
    %86 = vmatprep.subr.mxu0 0.0
    %87 = vmatpush1.msra.mxu0 0.0
    %88 = vmatprep.subr.mxu0 0.0
    %89 = vmatpush1.msra.mxu0 0.0
    %90 = vmatprep.subr.mxu0 0.0
    %91 = vmatpush1.msra.mxu0 0.0
    %92 = vmatprep.subr.mxu0 0.0
    %93 = vmatpush1.msra.mxu0 0.0
    %94 = vmatprep.subr.mxu0 0.0
    %95 = vmatpush1.msra.mxu0 0.0
    %96 = vmatprep.subr.mxu0 0.0
    %97 = vmatpush1.msra.mxu0 0.0
    %98 = vmatprep.subr.mxu0 0.0
    %99 = vmatpush1.msra.mxu0 0.0
    %100 = vmatprep.subr.mxu0 0.0
    %101 = vmatpush1.msra.mxu0 0.0
    %102 = vmatprep.subr.mxu0 0.0
    %103 = vmatpush1.msra.mxu0 0.0
    %104 = vmatprep.subr.mxu0 0.0
    %105 = vmatpush1.msra.mxu0 0.0
    %106 = vmatprep.subr.mxu0 0.0
    %107 = vmatpush1.msra.mxu0 0.0
    %108 = vmatprep.subr.mxu0 0.0
    %109 = vmatpush1.msra.mxu0 0.0
    %110 = vmatprep.subr.mxu0 0.0
    %111 = vmatpush1.msra.mxu0 0.0
    %112 = vmatprep.subr.mxu0 0.0
    %113 = vmatpush1.msra.mxu0 0.0
    %114 = vmatprep.subr.mxu0 0.0
    %115 = vmatpush1.msra.mxu0 0.0
    %116 = vmatprep.subr.mxu0 0.0
    %117 = vmatpush1.msra.mxu0 0.0
    %118 = vmatprep.subr.mxu0 0.0
    %119 = vmatpush1.msra.mxu0 0.0
    %120 = vmatprep.subr.mxu0 0.0
    %121 = vmatpush1.msra.mxu0 0.0
    %122 = vmatprep.subr.mxu0 0.0
    %123 = vmatpush1.msra.mxu0 0.0
    %124 = vmatprep.subr.mxu0 0.0
    %125 = vmatpush1.msra.mxu0 0.0
    %126 = vmatprep.subr.mxu0 0.0
    %127 = vmatpush1.msra.mxu0 0.0
    %128 = vmatprep.subr.mxu0 0.0
    %129 = vmatpush1.msra.mxu0 0.0
    %130 = vmatprep.subr.mxu0 0.0
    %131 = vmatpush1.msra.mxu0 0.0
    %132 = vmatprep.subr.mxu0 0.0
    %133 = vmatpush1.msra.mxu0 0.0
    %134 = vmatprep.subr.mxu0 0.0
    %135 = vmatpush1.msra.mxu0 0.0
    %136 = vmatprep.mubr.f32.mxu0 0.0
    %137 = vmatmul.mubr.f32.gmra.mrb[0].mxu0 %v67
    %v138 = vpop.f32.mrb[0].mxu0
    %v139 = vadd.f32 0.0, %v138
    %v140 = vpop.f32.mrb[0].mxu0
    %141 = vmatprep.mubr.f32.mxu0 0.0
    %142 = vmatmul.mubr.f32.gmra.mrb[0].mxu0 %v70
    %v143 = vpop.f32.mrb[0].mxu0
    %v144 = vadd.f32 0.0, %v143
    %v145 = vpop.f32.mrb[0].mxu0
    %146 = vdwg.mxu0
    %v147 = vld [vmem:[%s3] sm:$0x1]
    %149 = vrot.lane.b32.xlu0 %v139, 120
    %v150 = vpop.permute.xlu0 %149
    %151 = vrot.lane.b32.xlu0 %v139, 112
    %v152 = vpop.permute.xlu0 %151
    %153 = vrot.lane.b32.xlu0 %v139, 104
    %v154 = vpop.permute.xlu0 %153
    %155 = vrot.lane.b32.xlu0 %v139, 96
    %v156 = vpop.permute.xlu0 %155
    %157 = vrot.lane.b32.xlu0 %v150, 96
    %v158 = vpop.permute.xlu0 %157
    %159 = vrot.lane.b32.xlu0 %v152, 96
    %v160 = vpop.permute.xlu0 %159
    %161 = vrot.lane.b32.xlu0 %v154, 96
    %v162 = vpop.permute.xlu0 %161
    %167 = vxpose.xlu0.b32.start [1/16] %v156, 128
    %168 = vxpose.xlu0.b32.cont [2/16] 0.0, 128
    %169 = vxpose.xlu0.b32.cont [3/16] 0.0, 128
    %170 = vxpose.xlu0.b32.cont [4/16] 0.0, 128
    %171 = vxpose.xlu0.b32.cont [5/16] 0.0, 128
    %172 = vxpose.xlu0.b32.cont [6/16] 0.0, 128
    %173 = vxpose.xlu0.b32.cont [7/16] 0.0, 128
    %174 = vxpose.xlu0.b32.cont [8/16] 0.0, 128
    %175 = vxpose.xlu0.b32.cont [9/16] 0.0, 128
    %176 = vxpose.xlu0.b32.cont [10/16] 0.0, 128
    %177 = vxpose.xlu0.b32.cont [11/16] 0.0, 128
    %178 = vxpose.xlu0.b32.cont [12/16] 0.0, 128
    %179 = vxpose.xlu0.b32.cont [13/16] 0.0, 128
    %180 = vxpose.xlu0.b32.cont [14/16] 0.0, 128
    %181 = vxpose.xlu0.b32.cont [15/16] 0.0, 128
    %182 = vxpose.xlu0.b32.end [16/16] 0.0, 128
    %v183 = vpop.trf.xlu0
    %v184 = vpop.trf.xlu0
    %v185 = vpop.trf.xlu0
    %v186 = vpop.trf.xlu0
    %v187 = vpop.trf.xlu0
    %v188 = vpop.trf.xlu0
    %v189 = vpop.trf.xlu0
    %v190 = vpop.trf.xlu0
    %v191 = vpop.trf.xlu0
    %v192 = vpop.trf.xlu0
    %v193 = vpop.trf.xlu0
    %v194 = vpop.trf.xlu0
    %v195 = vpop.trf.xlu0
    %v196 = vpop.trf.xlu0
    %v197 = vpop.trf.xlu0
    %v198 = vpop.trf.xlu0
    %199 = vxpose.xlu0.b32.start [1/16] %v158, 128
    %200 = vxpose.xlu0.b32.cont [2/16] 0.0, 128
    %201 = vxpose.xlu0.b32.cont [3/16] 0.0, 128
    %202 = vxpose.xlu0.b32.cont [4/16] 0.0, 128
    %203 = vxpose.xlu0.b32.cont [5/16] 0.0, 128
    %204 = vxpose.xlu0.b32.cont [6/16] 0.0, 128
    %205 = vxpose.xlu0.b32.cont [7/16] 0.0, 128
    %206 = vxpose.xlu0.b32.cont [8/16] 0.0, 128
    %207 = vxpose.xlu0.b32.cont [9/16] 0.0, 128
    %208 = vxpose.xlu0.b32.cont [10/16] 0.0, 128
    %209 = vxpose.xlu0.b32.cont [11/16] 0.0, 128
    %210 = vxpose.xlu0.b32.cont [12/16] 0.0, 128
    %211 = vxpose.xlu0.b32.cont [13/16] 0.0, 128
    %212 = vxpose.xlu0.b32.cont [14/16] 0.0, 128
    %213 = vxpose.xlu0.b32.cont [15/16] 0.0, 128
    %214 = vxpose.xlu0.b32.end [16/16] 0.0, 128
    %v215 = vpop.trf.xlu0
    %v216 = vpop.trf.xlu0
    %v217 = vpop.trf.xlu0
    %v218 = vpop.trf.xlu0
    %v219 = vpop.trf.xlu0
    %v220 = vpop.trf.xlu0
    %v221 = vpop.trf.xlu0
    %v222 = vpop.trf.xlu0
    %v223 = vpop.trf.xlu0
    %v224 = vpop.trf.xlu0
    %v225 = vpop.trf.xlu0
    %v226 = vpop.trf.xlu0
    %v227 = vpop.trf.xlu0
    %v228 = vpop.trf.xlu0
    %v229 = vpop.trf.xlu0
    %v230 = vpop.trf.xlu0
    %231 = vxpose.xlu0.b32.start [1/16] %v160, 128
    %232 = vxpose.xlu0.b32.cont [2/16] 0.0, 128
    %233 = vxpose.xlu0.b32.cont [3/16] 0.0, 128
    %234 = vxpose.xlu0.b32.cont [4/16] 0.0, 128
    %235 = vxpose.xlu0.b32.cont [5/16] 0.0, 128
    %236 = vxpose.xlu0.b32.cont [6/16] 0.0, 128
    %237 = vxpose.xlu0.b32.cont [7/16] 0.0, 128
    %238 = vxpose.xlu0.b32.cont [8/16] 0.0, 128
    %239 = vxpose.xlu0.b32.cont [9/16] 0.0, 128
    %240 = vxpose.xlu0.b32.cont [10/16] 0.0, 128
    %241 = vxpose.xlu0.b32.cont [11/16] 0.0, 128
    %242 = vxpose.xlu0.b32.cont [12/16] 0.0, 128
    %243 = vxpose.xlu0.b32.cont [13/16] 0.0, 128
    %244 = vxpose.xlu0.b32.cont [14/16] 0.0, 128
    %245 = vxpose.xlu0.b32.cont [15/16] 0.0, 128
    %246 = vxpose.xlu0.b32.end [16/16] 0.0, 128
    %v247 = vpop.trf.xlu0
    %v248 = vpop.trf.xlu0
    %v249 = vpop.trf.xlu0
    %v250 = vpop.trf.xlu0
    %v251 = vpop.trf.xlu0
    %v252 = vpop.trf.xlu0
    %v253 = vpop.trf.xlu0
    %v254 = vpop.trf.xlu0
    %v255 = vpop.trf.xlu0
    %v256 = vpop.trf.xlu0
    %v257 = vpop.trf.xlu0
    %v258 = vpop.trf.xlu0
    %v259 = vpop.trf.xlu0
    %v260 = vpop.trf.xlu0
    %v261 = vpop.trf.xlu0
    %v262 = vpop.trf.xlu0
    %263 = vxpose.xlu0.b32.start [1/16] %v162, 128
    %264 = vxpose.xlu0.b32.cont [2/16] 0.0, 128
    %265 = vxpose.xlu0.b32.cont [3/16] 0.0, 128
    %266 = vxpose.xlu0.b32.cont [4/16] 0.0, 128
    %267 = vxpose.xlu0.b32.cont [5/16] 0.0, 128
    %268 = vxpose.xlu0.b32.cont [6/16] 0.0, 128
    %269 = vxpose.xlu0.b32.cont [7/16] 0.0, 128
    %270 = vxpose.xlu0.b32.cont [8/16] 0.0, 128
    %271 = vxpose.xlu0.b32.cont [9/16] 0.0, 128
    %272 = vxpose.xlu0.b32.cont [10/16] 0.0, 128
    %273 = vxpose.xlu0.b32.cont [11/16] 0.0, 128
    %274 = vxpose.xlu0.b32.cont [12/16] 0.0, 128
    %275 = vxpose.xlu0.b32.cont [13/16] 0.0, 128
    %276 = vxpose.xlu0.b32.cont [14/16] 0.0, 128
    %277 = vxpose.xlu0.b32.cont [15/16] 0.0, 128
    %278 = vxpose.xlu0.b32.end [16/16] 0.0, 128
    %v279 = vpop.trf.xlu0
    %v280 = vpop.trf.xlu0
    %v281 = vpop.trf.xlu0
    %v282 = vpop.trf.xlu0
    %v283 = vpop.trf.xlu0
    %v284 = vpop.trf.xlu0
    %v285 = vpop.trf.xlu0
    %v286 = vpop.trf.xlu0
    %v287 = vpop.trf.xlu0
    %v288 = vpop.trf.xlu0
    %v289 = vpop.trf.xlu0
    %v290 = vpop.trf.xlu0
    %v291 = vpop.trf.xlu0
    %v292 = vpop.trf.xlu0
    %v293 = vpop.trf.xlu0
    %v294 = vpop.trf.xlu0
    %vm295 = vcmask 64512
    %v296 = vsel %vm295, %v139, 0
    %298 = vmatprep.subr.mxu0 0.0
    %299 = vmatpush1.msra.mxu0 %v183
    %300 = vmatprep.subr.mxu0 0.0
    %301 = vmatpush1.msra.mxu0 0.0
    %302 = vmatprep.subr.mxu0 0.0
    %303 = vmatpush1.msra.mxu0 0.0
    %304 = vmatprep.subr.mxu0 0.0
    %305 = vmatpush1.msra.mxu0 0.0
    %306 = vmatprep.subr.mxu0 0.0
    %307 = vmatpush1.msra.mxu0 0.0
    %308 = vmatprep.subr.mxu0 0.0
    %309 = vmatpush1.msra.mxu0 0.0
    %310 = vmatprep.subr.mxu0 0.0
    %311 = vmatpush1.msra.mxu0 0.0
    %312 = vmatprep.subr.mxu0 0.0
    %313 = vmatpush1.msra.mxu0 0.0
    %314 = vmatprep.subr.mxu0 0.0
    %315 = vmatpush1.msra.mxu0 0.0
    %316 = vmatprep.subr.mxu0 0.0
    %317 = vmatpush1.msra.mxu0 0.0
    %318 = vmatprep.subr.mxu0 0.0
    %319 = vmatpush1.msra.mxu0 0.0
    %320 = vmatprep.subr.mxu0 0.0
    %321 = vmatpush1.msra.mxu0 0.0
    %322 = vmatprep.subr.mxu0 0.0
    %323 = vmatpush1.msra.mxu0 0.0
    %324 = vmatprep.subr.mxu0 0.0
    %325 = vmatpush1.msra.mxu0 0.0
    %326 = vmatprep.subr.mxu0 0.0
    %327 = vmatpush1.msra.mxu0 0.0
    %328 = vmatprep.subr.mxu0 0.0
    %329 = vmatpush1.msra.mxu0 0.0
    %330 = vmatprep.subr.mxu0 0.0
    %331 = vmatpush1.msra.mxu0 0.0
    %332 = vmatprep.subr.mxu0 0.0
    %333 = vmatpush1.msra.mxu0 0.0
    %334 = vmatprep.subr.mxu0 0.0
    %335 = vmatpush1.msra.mxu0 0.0
    %336 = vmatprep.subr.mxu0 0.0
    %337 = vmatpush1.msra.mxu0 0.0
    %338 = vmatprep.subr.mxu0 0.0
    %339 = vmatpush1.msra.mxu0 0.0
    %340 = vmatprep.subr.mxu0 0.0
    %341 = vmatpush1.msra.mxu0 0.0
    %342 = vmatprep.subr.mxu0 0.0
    %343 = vmatpush1.msra.mxu0 0.0
    %344 = vmatprep.subr.mxu0 0.0
    %345 = vmatpush1.msra.mxu0 0.0
    %346 = vmatprep.subr.mxu0 0.0
    %347 = vmatpush1.msra.mxu0 0.0
    %348 = vmatprep.subr.mxu0 0.0
    %349 = vmatpush1.msra.mxu0 0.0
    %350 = vmatprep.subr.mxu0 0.0
    %351 = vmatpush1.msra.mxu0 0.0
    %352 = vmatprep.subr.mxu0 0.0
    %353 = vmatpush1.msra.mxu0 0.0
    %354 = vmatprep.subr.mxu0 0.0
    %355 = vmatpush1.msra.mxu0 0.0
    %356 = vmatprep.subr.mxu0 0.0
    %357 = vmatpush1.msra.mxu0 0.0
    %358 = vmatprep.subr.mxu0 0.0
    %359 = vmatpush1.msra.mxu0 0.0
    %360 = vmatprep.subr.mxu0 0.0
    %361 = vmatpush1.msra.mxu0 0.0
    %362 = vmatprep.mubr.f32.mxu0 0.0
    %363 = vmatmul.mubr.f32.gmra.mrb[0].mxu0 %v296
    %v364 = vpop.f32.mrb[0].mxu0
    %v365 = vadd.f32 0.0, %v364
    %v366 = vpop.f32.mrb[0].mxu0
    %367 = vdwg.mxu0
    %v368 = vsel %vm295, %v150, 0
    %370 = vmatprep.subr.mxu0 0.0
    %371 = vmatpush1.msra.mxu0 %v215
    %372 = vmatprep.subr.mxu0 0.0
    %373 = vmatpush1.msra.mxu0 0.0
    %374 = vmatprep.subr.mxu0 0.0
    %375 = vmatpush1.msra.mxu0 0.0
    %376 = vmatprep.subr.mxu0 0.0
    %377 = vmatpush1.msra.mxu0 0.0
    %378 = vmatprep.subr.mxu0 0.0
    %379 = vmatpush1.msra.mxu0 0.0
    %380 = vmatprep.subr.mxu0 0.0
    %381 = vmatpush1.msra.mxu0 0.0
    %382 = vmatprep.subr.mxu0 0.0
    %383 = vmatpush1.msra.mxu0 0.0
    %384 = vmatprep.subr.mxu0 0.0
    %385 = vmatpush1.msra.mxu0 0.0
    %386 = vmatprep.subr.mxu0 0.0
    %387 = vmatpush1.msra.mxu0 0.0
    %388 = vmatprep.subr.mxu0 0.0
    %389 = vmatpush1.msra.mxu0 0.0
    %390 = vmatprep.subr.mxu0 0.0
    %391 = vmatpush1.msra.mxu0 0.0
    %392 = vmatprep.subr.mxu0 0.0
    %393 = vmatpush1.msra.mxu0 0.0
    %394 = vmatprep.subr.mxu0 0.0
    %395 = vmatpush1.msra.mxu0 0.0
    %396 = vmatprep.subr.mxu0 0.0
    %397 = vmatpush1.msra.mxu0 0.0
    %398 = vmatprep.subr.mxu0 0.0
    %399 = vmatpush1.msra.mxu0 0.0
    %400 = vmatprep.subr.mxu0 0.0
    %401 = vmatpush1.msra.mxu0 0.0
    %402 = vmatprep.subr.mxu0 0.0
    %403 = vmatpush1.msra.mxu0 0.0
    %404 = vmatprep.subr.mxu0 0.0
    %405 = vmatpush1.msra.mxu0 0.0
    %406 = vmatprep.subr.mxu0 0.0
    %407 = vmatpush1.msra.mxu0 0.0
    %408 = vmatprep.subr.mxu0 0.0
    %409 = vmatpush1.msra.mxu0 0.0
    %410 = vmatprep.subr.mxu0 0.0
    %411 = vmatpush1.msra.mxu0 0.0
    %412 = vmatprep.subr.mxu0 0.0
    %413 = vmatpush1.msra.mxu0 0.0
    %414 = vmatprep.subr.mxu0 0.0
    %415 = vmatpush1.msra.mxu0 0.0
    %416 = vmatprep.subr.mxu0 0.0
    %417 = vmatpush1.msra.mxu0 0.0
    %418 = vmatprep.subr.mxu0 0.0
    %419 = vmatpush1.msra.mxu0 0.0
    %420 = vmatprep.subr.mxu0 0.0
    %421 = vmatpush1.msra.mxu0 0.0
    %422 = vmatprep.subr.mxu0 0.0
    %423 = vmatpush1.msra.mxu0 0.0
    %424 = vmatprep.subr.mxu0 0.0
    %425 = vmatpush1.msra.mxu0 0.0
    %426 = vmatprep.subr.mxu0 0.0
    %427 = vmatpush1.msra.mxu0 0.0
    %428 = vmatprep.subr.mxu0 0.0
    %429 = vmatpush1.msra.mxu0 0.0
    %430 = vmatprep.subr.mxu0 0.0
    %431 = vmatpush1.msra.mxu0 0.0
    %432 = vmatprep.subr.mxu0 0.0
    %433 = vmatpush1.msra.mxu0 0.0
    %434 = vmatprep.mubr.f32.mxu0 0.0
    %435 = vmatmul.mubr.f32.gmra.mrb[0].mxu0 %v368
    %v436 = vpop.f32.mrb[0].mxu0
    %v437 = vadd.f32 0.0, %v436
    %v438 = vpop.f32.mrb[0].mxu0
    %439 = vdwg.mxu0
    %v440 = vsel %vm295, %v152, 0
    %442 = vmatprep.subr.mxu0 0.0
    %443 = vmatpush1.msra.mxu0 %v247
    %444 = vmatprep.subr.mxu0 0.0
    %445 = vmatpush1.msra.mxu0 0.0
    %446 = vmatprep.subr.mxu0 0.0
    %447 = vmatpush1.msra.mxu0 0.0
    %448 = vmatprep.subr.mxu0 0.0
    %449 = vmatpush1.msra.mxu0 0.0
    %450 = vmatprep.subr.mxu0 0.0
    %451 = vmatpush1.msra.mxu0 0.0
    %452 = vmatprep.subr.mxu0 0.0
    %453 = vmatpush1.msra.mxu0 0.0
    %454 = vmatprep.subr.mxu0 0.0
    %455 = vmatpush1.msra.mxu0 0.0
    %456 = vmatprep.subr.mxu0 0.0
    %457 = vmatpush1.msra.mxu0 0.0
    %458 = vmatprep.subr.mxu0 0.0
    %459 = vmatpush1.msra.mxu0 0.0
    %460 = vmatprep.subr.mxu0 0.0
    %461 = vmatpush1.msra.mxu0 0.0
    %462 = vmatprep.subr.mxu0 0.0
    %463 = vmatpush1.msra.mxu0 0.0
    %464 = vmatprep.subr.mxu0 0.0
    %465 = vmatpush1.msra.mxu0 0.0
    %466 = vmatprep.subr.mxu0 0.0
    %467 = vmatpush1.msra.mxu0 0.0
    %468 = vmatprep.subr.mxu0 0.0
    %469 = vmatpush1.msra.mxu0 0.0
    %470 = vmatprep.subr.mxu0 0.0
    %471 = vmatpush1.msra.mxu0 0.0
    %472 = vmatprep.subr.mxu0 0.0
    %473 = vmatpush1.msra.mxu0 0.0
    %474 = vmatprep.subr.mxu0 0.0
    %475 = vmatpush1.msra.mxu0 0.0
    %476 = vmatprep.subr.mxu0 0.0
    %477 = vmatpush1.msra.mxu0 0.0
    %478 = vmatprep.subr.mxu0 0.0
    %479 = vmatpush1.msra.mxu0 0.0
    %480 = vmatprep.subr.mxu0 0.0
    %481 = vmatpush1.msra.mxu0 0.0
    %482 = vmatprep.subr.mxu0 0.0
    %483 = vmatpush1.msra.mxu0 0.0
    %484 = vmatprep.subr.mxu0 0.0
    %485 = vmatpush1.msra.mxu0 0.0
    %486 = vmatprep.subr.mxu0 0.0
    %487 = vmatpush1.msra.mxu0 0.0
    %488 = vmatprep.subr.mxu0 0.0
    %489 = vmatpush1.msra.mxu0 0.0
    %490 = vmatprep.subr.mxu0 0.0
    %491 = vmatpush1.msra.mxu0 0.0
    %492 = vmatprep.subr.mxu0 0.0
    %493 = vmatpush1.msra.mxu0 0.0
    %494 = vmatprep.subr.mxu0 0.0
    %495 = vmatpush1.msra.mxu0 0.0
    %496 = vmatprep.subr.mxu0 0.0
    %497 = vmatpush1.msra.mxu0 0.0
    %498 = vmatprep.subr.mxu0 0.0
    %499 = vmatpush1.msra.mxu0 0.0
    %500 = vmatprep.subr.mxu0 0.0
    %501 = vmatpush1.msra.mxu0 0.0
    %502 = vmatprep.subr.mxu0 0.0
    %503 = vmatpush1.msra.mxu0 0.0
    %504 = vmatprep.subr.mxu0 0.0
    %505 = vmatpush1.msra.mxu0 0.0
    %506 = vmatprep.mubr.f32.mxu0 0.0
    %507 = vmatmul.mubr.f32.gmra.mrb[0].mxu0 %v440
    %v508 = vpop.f32.mrb[0].mxu0
    %v509 = vadd.f32 0.0, %v508
    %v510 = vpop.f32.mrb[0].mxu0
    %511 = vdwg.mxu0
    %v512 = vsel %vm295, %v154, 0
    %514 = vmatprep.subr.mxu0 0.0
    %515 = vmatpush1.msra.mxu0 %v279
    %516 = vmatprep.subr.mxu0 0.0
    %517 = vmatpush1.msra.mxu0 0.0
    %518 = vmatprep.subr.mxu0 0.0
    %519 = vmatpush1.msra.mxu0 0.0
    %520 = vmatprep.subr.mxu0 0.0
    %521 = vmatpush1.msra.mxu0 0.0
    %522 = vmatprep.subr.mxu0 0.0
    %523 = vmatpush1.msra.mxu0 0.0
    %524 = vmatprep.subr.mxu0 0.0
    %525 = vmatpush1.msra.mxu0 0.0
    %526 = vmatprep.subr.mxu0 0.0
    %527 = vmatpush1.msra.mxu0 0.0
    %528 = vmatprep.subr.mxu0 0.0
    %529 = vmatpush1.msra.mxu0 0.0
    %530 = vmatprep.subr.mxu0 0.0
    %531 = vmatpush1.msra.mxu0 0.0
    %532 = vmatprep.subr.mxu0 0.0
    %533 = vmatpush1.msra.mxu0 0.0
    %534 = vmatprep.subr.mxu0 0.0
    %535 = vmatpush1.msra.mxu0 0.0
    %536 = vmatprep.subr.mxu0 0.0
    %537 = vmatpush1.msra.mxu0 0.0
    %538 = vmatprep.subr.mxu0 0.0
    %539 = vmatpush1.msra.mxu0 0.0
    %540 = vmatprep.subr.mxu0 0.0
    %541 = vmatpush1.msra.mxu0 0.0
    %542 = vmatprep.subr.mxu0 0.0
    %543 = vmatpush1.msra.mxu0 0.0
    %544 = vmatprep.subr.mxu0 0.0
    %545 = vmatpush1.msra.mxu0 0.0
    %546 = vmatprep.subr.mxu0 0.0
    %547 = vmatpush1.msra.mxu0 0.0
    %548 = vmatprep.subr.mxu0 0.0
    %549 = vmatpush1.msra.mxu0 0.0
    %550 = vmatprep.subr.mxu0 0.0
    %551 = vmatpush1.msra.mxu0 0.0
    %552 = vmatprep.subr.mxu0 0.0
    %553 = vmatpush1.msra.mxu0 0.0
    %554 = vmatprep.subr.mxu0 0.0
    %555 = vmatpush1.msra.mxu0 0.0
    %556 = vmatprep.subr.mxu0 0.0
    %557 = vmatpush1.msra.mxu0 0.0
    %558 = vmatprep.subr.mxu0 0.0
    %559 = vmatpush1.msra.mxu0 0.0
    %560 = vmatprep.subr.mxu0 0.0
    %561 = vmatpush1.msra.mxu0 0.0
    %562 = vmatprep.subr.mxu0 0.0
    %563 = vmatpush1.msra.mxu0 0.0
    %564 = vmatprep.subr.mxu0 0.0
    %565 = vmatpush1.msra.mxu0 0.0
    %566 = vmatprep.subr.mxu0 0.0
    %567 = vmatpush1.msra.mxu0 0.0
    %568 = vmatprep.subr.mxu0 0.0
    %569 = vmatpush1.msra.mxu0 0.0
    %570 = vmatprep.subr.mxu0 0.0
    %571 = vmatpush1.msra.mxu0 0.0
    %572 = vmatprep.subr.mxu0 0.0
    %573 = vmatpush1.msra.mxu0 0.0
    %574 = vmatprep.subr.mxu0 0.0
    %575 = vmatpush1.msra.mxu0 0.0
    %576 = vmatprep.subr.mxu0 0.0
    %577 = vmatpush1.msra.mxu0 0.0
    %578 = vmatprep.mubr.f32.mxu0 0.0
    %579 = vmatmul.mubr.f32.gmra.mrb[0].mxu0 %v512
    %v580 = vpop.f32.mrb[0].mxu0
    %v581 = vadd.f32 0.0, %v580
    %v582 = vpop.f32.mrb[0].mxu0
    %583 = vdwg.mxu0
    %v584 = vmul.f32 %v365, 0.35355338
    %v585 = vmul.f32 %v437, 0.35355338
    %v586 = vmul.f32 %v509, 0.35355338
    %v587 = vmul.f32 %v581, 0.35355338
    %v588 = vsel %vm295, %v584, -inf
    %589 = vmax.xlane.f32.xlu0 %v588
    %v590 = vpop.xlane.xlu0 %589
    %v591 = vsel %vm295, %v585, -inf
    %592 = vmax.xlane.f32.xlu0 %v591
    %v593 = vpop.xlane.xlu0 %592
    %v594 = vsel %vm295, %v586, -inf
    %595 = vmax.xlane.f32.xlu0 %v594
    %v596 = vpop.xlane.xlu0 %595
    %v597 = vsel %vm295, %v587, -inf
    %598 = vmax.xlane.f32.xlu0 %v597
    %v599 = vpop.xlane.xlu0 %598
    %v600 = vsub.f32 %v584, %v590
    %v601 = vsub.f32 %v585, %v593
    %v602 = vsub.f32 %v586, %v596
    %v603 = vsub.f32 %v587, %v599
    %v604 = vmul.f32 %v600, 1.442695
    %v605 = vpow.pop %v604
    %v606 = vmul.f32 %v601, 1.442695
    %v607 = vpow.pop %v606
    %v608 = vmul.f32 %v602, 1.442695
    %v609 = vpow.pop %v608
    %v610 = vmul.f32 %v603, 1.442695
    %v611 = vpow.pop %v610
    %v612 = vsel %vm295, %v605, 0.0
    %613 = vadd.xlane.f32.xlu0 %v612
    %v614 = vpop.xlane.xlu0 %613
    %v615 = vsel %vm295, %v607, 0.0
    %616 = vadd.xlane.f32.xlu0 %v615
    %v617 = vpop.xlane.xlu0 %616
    %v618 = vsel %vm295, %v609, 0.0
    %619 = vadd.xlane.f32.xlu0 %v618
    %v620 = vpop.xlane.xlu0 %619
    %v621 = vsel %vm295, %v611, 0.0
    %622 = vadd.xlane.f32.xlu0 %v621
    %v623 = vpop.xlane.xlu0 %622
    %v624 = vrcp.pop %v614
    %v625 = vrcp.pop %v617
    %v626 = vrcp.pop %v620
    %v627 = vrcp.pop %v623
    %v628 = vmul.f32 %v605, %v624
    %v629 = vmul.f32 %v607, %v625
    %v630 = vmul.f32 %v609, %v626
    %v631 = vmul.f32 %v611, %v627
    %632 = vrot.lane.b32.xlu0 %v139, 64
    %v633 = vpop.permute.xlu0 %632
    %v636 = vsel %vm295, %v628, 0
    %638 = vmatprep.subr.mxu0 0.0
    %639 = vmatpush1.msra.mxu0 %v633
    %640 = vmatprep.subr.mxu0 0.0
    %641 = vmatpush1.msra.mxu0 0.0
    %642 = vmatprep.subr.mxu0 0.0
    %643 = vmatpush1.msra.mxu0 0.0
    %644 = vmatprep.subr.mxu0 0.0
    %645 = vmatpush1.msra.mxu0 0.0
    %646 = vmatprep.subr.mxu0 0.0
    %647 = vmatpush1.msra.mxu0 0.0
    %648 = vmatprep.subr.mxu0 0.0
    %649 = vmatpush1.msra.mxu0 0.0
    %650 = vmatprep.subr.mxu0 0.0
    %651 = vmatpush1.msra.mxu0 0.0
    %652 = vmatprep.subr.mxu0 0.0
    %653 = vmatpush1.msra.mxu0 0.0
    %654 = vmatprep.subr.mxu0 0.0
    %655 = vmatpush1.msra.mxu0 0.0
    %656 = vmatprep.subr.mxu0 0.0
    %657 = vmatpush1.msra.mxu0 0.0
    %658 = vmatprep.subr.mxu0 0.0
    %659 = vmatpush1.msra.mxu0 0.0
    %660 = vmatprep.subr.mxu0 0.0
    %661 = vmatpush1.msra.mxu0 0.0
    %662 = vmatprep.subr.mxu0 0.0
    %663 = vmatpush1.msra.mxu0 0.0
    %664 = vmatprep.subr.mxu0 0.0
    %665 = vmatpush1.msra.mxu0 0.0
    %666 = vmatprep.subr.mxu0 0.0
    %667 = vmatpush1.msra.mxu0 0.0
    %668 = vmatprep.subr.mxu0 0.0
    %669 = vmatpush1.msra.mxu0 0.0
    %670 = vmatprep.subr.mxu0 0.0
    %671 = vmatpush1.msra.mxu0 0.0
    %672 = vmatprep.subr.mxu0 0.0
    %673 = vmatpush1.msra.mxu0 0.0
    %674 = vmatprep.subr.mxu0 0.0
    %675 = vmatpush1.msra.mxu0 0.0
    %676 = vmatprep.subr.mxu0 0.0
    %677 = vmatpush1.msra.mxu0 0.0
    %678 = vmatprep.subr.mxu0 0.0
    %679 = vmatpush1.msra.mxu0 0.0
    %680 = vmatprep.subr.mxu0 0.0
    %681 = vmatpush1.msra.mxu0 0.0
    %682 = vmatprep.subr.mxu0 0.0
    %683 = vmatpush1.msra.mxu0 0.0
    %684 = vmatprep.subr.mxu0 0.0
    %685 = vmatpush1.msra.mxu0 0.0
    %686 = vmatprep.subr.mxu0 0.0
    %687 = vmatpush1.msra.mxu0 0.0
    %688 = vmatprep.subr.mxu0 0.0
    %689 = vmatpush1.msra.mxu0 0.0
    %690 = vmatprep.subr.mxu0 0.0
    %691 = vmatpush1.msra.mxu0 0.0
    %692 = vmatprep.subr.mxu0 0.0
    %693 = vmatpush1.msra.mxu0 0.0
    %694 = vmatprep.subr.mxu0 0.0
    %695 = vmatpush1.msra.mxu0 0.0
    %696 = vmatprep.subr.mxu0 0.0
    %697 = vmatpush1.msra.mxu0 0.0
    %698 = vmatprep.subr.mxu0 0.0
    %699 = vmatpush1.msra.mxu0 0.0
    %700 = vmatprep.subr.mxu0 0.0
    %701 = vmatpush1.msra.mxu0 0.0
    %702 = vmatprep.mubr.f32.mxu0 0.0
    %703 = vmatmul.mubr.f32.gmra.mrb[0].mxu0 %v636
    %v704 = vpop.f32.mrb[0].mxu0
    %v705 = vadd.f32 0.0, %v704
    %v706 = vpop.f32.mrb[0].mxu0
    %707 = vdwg.mxu0
    %708 = vrot.lane.b32.xlu0 %v150, 64
    %v709 = vpop.permute.xlu0 %708
    %v712 = vsel %vm295, %v629, 0
    %714 = vmatprep.subr.mxu0 0.0
    %715 = vmatpush1.msra.mxu0 %v709
    %716 = vmatprep.subr.mxu0 0.0
    %717 = vmatpush1.msra.mxu0 0.0
    %718 = vmatprep.subr.mxu0 0.0
    %719 = vmatpush1.msra.mxu0 0.0
    %720 = vmatprep.subr.mxu0 0.0
    %721 = vmatpush1.msra.mxu0 0.0
    %722 = vmatprep.subr.mxu0 0.0
    %723 = vmatpush1.msra.mxu0 0.0
    %724 = vmatprep.subr.mxu0 0.0
    %725 = vmatpush1.msra.mxu0 0.0
    %726 = vmatprep.subr.mxu0 0.0
    %727 = vmatpush1.msra.mxu0 0.0
    %728 = vmatprep.subr.mxu0 0.0
    %729 = vmatpush1.msra.mxu0 0.0
    %730 = vmatprep.subr.mxu0 0.0
    %731 = vmatpush1.msra.mxu0 0.0
    %732 = vmatprep.subr.mxu0 0.0
    %733 = vmatpush1.msra.mxu0 0.0
    %734 = vmatprep.subr.mxu0 0.0
    %735 = vmatpush1.msra.mxu0 0.0
    %736 = vmatprep.subr.mxu0 0.0
    %737 = vmatpush1.msra.mxu0 0.0
    %738 = vmatprep.subr.mxu0 0.0
    %739 = vmatpush1.msra.mxu0 0.0
    %740 = vmatprep.subr.mxu0 0.0
    %741 = vmatpush1.msra.mxu0 0.0
    %742 = vmatprep.subr.mxu0 0.0
    %743 = vmatpush1.msra.mxu0 0.0
    %744 = vmatprep.subr.mxu0 0.0
    %745 = vmatpush1.msra.mxu0 0.0
    %746 = vmatprep.subr.mxu0 0.0
    %747 = vmatpush1.msra.mxu0 0.0
    %748 = vmatprep.subr.mxu0 0.0
    %749 = vmatpush1.msra.mxu0 0.0
    %750 = vmatprep.subr.mxu0 0.0
    %751 = vmatpush1.msra.mxu0 0.0
    %752 = vmatprep.subr.mxu0 0.0
    %753 = vmatpush1.msra.mxu0 0.0
    %754 = vmatprep.subr.mxu0 0.0
    %755 = vmatpush1.msra.mxu0 0.0
    %756 = vmatprep.subr.mxu0 0.0
    %757 = vmatpush1.msra.mxu0 0.0
    %758 = vmatprep.subr.mxu0 0.0
    %759 = vmatpush1.msra.mxu0 0.0
    %760 = vmatprep.subr.mxu0 0.0
    %761 = vmatpush1.msra.mxu0 0.0
    %762 = vmatprep.subr.mxu0 0.0
    %763 = vmatpush1.msra.mxu0 0.0
    %764 = vmatprep.subr.mxu0 0.0
    %765 = vmatpush1.msra.mxu0 0.0
    %766 = vmatprep.subr.mxu0 0.0
    %767 = vmatpush1.msra.mxu0 0.0
    %768 = vmatprep.subr.mxu0 0.0
    %769 = vmatpush1.msra.mxu0 0.0
    %770 = vmatprep.subr.mxu0 0.0
    %771 = vmatpush1.msra.mxu0 0.0
    %772 = vmatprep.subr.mxu0 0.0
    %773 = vmatpush1.msra.mxu0 0.0
    %774 = vmatprep.subr.mxu0 0.0
    %775 = vmatpush1.msra.mxu0 0.0
    %776 = vmatprep.subr.mxu0 0.0
    %777 = vmatpush1.msra.mxu0 0.0
    %778 = vmatprep.mubr.f32.mxu0 0.0
    %779 = vmatmul.mubr.f32.gmra.mrb[0].mxu0 %v712
    %v780 = vpop.f32.mrb[0].mxu0
    %v781 = vadd.f32 0.0, %v780
    %v782 = vpop.f32.mrb[0].mxu0
    %783 = vdwg.mxu0
    %784 = vrot.lane.b32.xlu0 %v152, 64
    %v785 = vpop.permute.xlu0 %784
    %v788 = vsel %vm295, %v630, 0
    %790 = vmatprep.subr.mxu0 0.0
    %791 = vmatpush1.msra.mxu0 %v785
    %792 = vmatprep.subr.mxu0 0.0
    %793 = vmatpush1.msra.mxu0 0.0
    %794 = vmatprep.subr.mxu0 0.0
    %795 = vmatpush1.msra.mxu0 0.0
    %796 = vmatprep.subr.mxu0 0.0
    %797 = vmatpush1.msra.mxu0 0.0
    %798 = vmatprep.subr.mxu0 0.0
    %799 = vmatpush1.msra.mxu0 0.0
    %800 = vmatprep.subr.mxu0 0.0
    %801 = vmatpush1.msra.mxu0 0.0
    %802 = vmatprep.subr.mxu0 0.0
    %803 = vmatpush1.msra.mxu0 0.0
    %804 = vmatprep.subr.mxu0 0.0
    %805 = vmatpush1.msra.mxu0 0.0
    %806 = vmatprep.subr.mxu0 0.0
    %807 = vmatpush1.msra.mxu0 0.0
    %808 = vmatprep.subr.mxu0 0.0
    %809 = vmatpush1.msra.mxu0 0.0
    %810 = vmatprep.subr.mxu0 0.0
    %811 = vmatpush1.msra.mxu0 0.0
    %812 = vmatprep.subr.mxu0 0.0
    %813 = vmatpush1.msra.mxu0 0.0
    %814 = vmatprep.subr.mxu0 0.0
    %815 = vmatpush1.msra.mxu0 0.0
    %816 = vmatprep.subr.mxu0 0.0
    %817 = vmatpush1.msra.mxu0 0.0
    %818 = vmatprep.subr.mxu0 0.0
    %819 = vmatpush1.msra.mxu0 0.0
    %820 = vmatprep.subr.mxu0 0.0
    %821 = vmatpush1.msra.mxu0 0.0
    %822 = vmatprep.subr.mxu0 0.0
    %823 = vmatpush1.msra.mxu0 0.0
    %824 = vmatprep.subr.mxu0 0.0
    %825 = vmatpush1.msra.mxu0 0.0
    %826 = vmatprep.subr.mxu0 0.0
    %827 = vmatpush1.msra.mxu0 0.0
    %828 = vmatprep.subr.mxu0 0.0
    %829 = vmatpush1.msra.mxu0 0.0
    %830 = vmatprep.subr.mxu0 0.0
    %831 = vmatpush1.msra.mxu0 0.0
    %832 = vmatprep.subr.mxu0 0.0
    %833 = vmatpush1.msra.mxu0 0.0
    %834 = vmatprep.subr.mxu0 0.0
    %835 = vmatpush1.msra.mxu0 0.0
    %836 = vmatprep.subr.mxu0 0.0
    %837 = vmatpush1.msra.mxu0 0.0
    %838 = vmatprep.subr.mxu0 0.0
    %839 = vmatpush1.msra.mxu0 0.0
    %840 = vmatprep.subr.mxu0 0.0
    %841 = vmatpush1.msra.mxu0 0.0
    %842 = vmatprep.subr.mxu0 0.0
    %843 = vmatpush1.msra.mxu0 0.0
    %844 = vmatprep.subr.mxu0 0.0
    %845 = vmatpush1.msra.mxu0 0.0
    %846 = vmatprep.subr.mxu0 0.0
    %847 = vmatpush1.msra.mxu0 0.0
    %848 = vmatprep.subr.mxu0 0.0
    %849 = vmatpush1.msra.mxu0 0.0
    %850 = vmatprep.subr.mxu0 0.0
    %851 = vmatpush1.msra.mxu0 0.0
    %852 = vmatprep.subr.mxu0 0.0
    %853 = vmatpush1.msra.mxu0 0.0
    %854 = vmatprep.mubr.f32.mxu0 0.0
    %855 = vmatmul.mubr.f32.gmra.mrb[0].mxu0 %v788
    %v856 = vpop.f32.mrb[0].mxu0
    %v857 = vadd.f32 0.0, %v856
    %v858 = vpop.f32.mrb[0].mxu0
    %859 = vdwg.mxu0
    %860 = vrot.lane.b32.xlu0 %v154, 64
    %v861 = vpop.permute.xlu0 %860
    %v864 = vsel %vm295, %v631, 0
    %866 = vmatprep.subr.mxu0 0.0
    %867 = vmatpush1.msra.mxu0 %v861
    %868 = vmatprep.subr.mxu0 0.0
    %869 = vmatpush1.msra.mxu0 0.0
    %870 = vmatprep.subr.mxu0 0.0
    %871 = vmatpush1.msra.mxu0 0.0
    %872 = vmatprep.subr.mxu0 0.0
    %873 = vmatpush1.msra.mxu0 0.0
    %874 = vmatprep.subr.mxu0 0.0
    %875 = vmatpush1.msra.mxu0 0.0
    %876 = vmatprep.subr.mxu0 0.0
    %877 = vmatpush1.msra.mxu0 0.0
    %878 = vmatprep.subr.mxu0 0.0
    %879 = vmatpush1.msra.mxu0 0.0
    %880 = vmatprep.subr.mxu0 0.0
    %881 = vmatpush1.msra.mxu0 0.0
    %882 = vmatprep.subr.mxu0 0.0
    %883 = vmatpush1.msra.mxu0 0.0
    %884 = vmatprep.subr.mxu0 0.0
    %885 = vmatpush1.msra.mxu0 0.0
    %886 = vmatprep.subr.mxu0 0.0
    %887 = vmatpush1.msra.mxu0 0.0
    %888 = vmatprep.subr.mxu0 0.0
    %889 = vmatpush1.msra.mxu0 0.0
    %890 = vmatprep.subr.mxu0 0.0
    %891 = vmatpush1.msra.mxu0 0.0
    %892 = vmatprep.subr.mxu0 0.0
    %893 = vmatpush1.msra.mxu0 0.0
    %894 = vmatprep.subr.mxu0 0.0
    %895 = vmatpush1.msra.mxu0 0.0
    %896 = vmatprep.subr.mxu0 0.0
    %897 = vmatpush1.msra.mxu0 0.0
    %898 = vmatprep.subr.mxu0 0.0
    %899 = vmatpush1.msra.mxu0 0.0
    %900 = vmatprep.subr.mxu0 0.0
    %901 = vmatpush1.msra.mxu0 0.0
    %902 = vmatprep.subr.mxu0 0.0
    %903 = vmatpush1.msra.mxu0 0.0
    %904 = vmatprep.subr.mxu0 0.0
    %905 = vmatpush1.msra.mxu0 0.0
    %906 = vmatprep.subr.mxu0 0.0
    %907 = vmatpush1.msra.mxu0 0.0
    %908 = vmatprep.subr.mxu0 0.0
    %909 = vmatpush1.msra.mxu0 0.0
    %910 = vmatprep.subr.mxu0 0.0
    %911 = vmatpush1.msra.mxu0 0.0
    %912 = vmatprep.subr.mxu0 0.0
    %913 = vmatpush1.msra.mxu0 0.0
    %914 = vmatprep.subr.mxu0 0.0
    %915 = vmatpush1.msra.mxu0 0.0
    %916 = vmatprep.subr.mxu0 0.0
    %917 = vmatpush1.msra.mxu0 0.0
    %918 = vmatprep.subr.mxu0 0.0
    %919 = vmatpush1.msra.mxu0 0.0
    %920 = vmatprep.subr.mxu0 0.0
    %921 = vmatpush1.msra.mxu0 0.0
    %922 = vmatprep.subr.mxu0 0.0
    %923 = vmatpush1.msra.mxu0 0.0
    %924 = vmatprep.subr.mxu0 0.0
    %925 = vmatpush1.msra.mxu0 0.0
    %926 = vmatprep.subr.mxu0 0.0
    %927 = vmatpush1.msra.mxu0 0.0
    %928 = vmatprep.subr.mxu0 0.0
    %929 = vmatpush1.msra.mxu0 0.0
    %930 = vmatprep.mubr.f32.mxu0 0.0
    %931 = vmatmul.mubr.f32.gmra.mrb[0].mxu0 %v864
    %v932 = vpop.f32.mrb[0].mxu0
    %v933 = vadd.f32 0.0, %v932
    %v934 = vpop.f32.mrb[0].mxu0
    %935 = vdwg.mxu0
    %v936 = vld [vmem:[#allocation7] sm:$0xff]
    %v938 = vsel %vm295, %v705, 0
    %940 = vmatprep.subr.mxu0 0.0
    %941 = vmatpush1.msra.mxu0 %v936
    %942 = vmatprep.subr.mxu0 0.0
    %943 = vmatpush1.msra.mxu0 0.0
    %944 = vmatprep.subr.mxu0 0.0
    %945 = vmatpush1.msra.mxu0 0.0
    %946 = vmatprep.subr.mxu0 0.0
    %947 = vmatpush1.msra.mxu0 0.0
    %948 = vmatprep.subr.mxu0 0.0
    %949 = vmatpush1.msra.mxu0 0.0
    %950 = vmatprep.subr.mxu0 0.0
    %951 = vmatpush1.msra.mxu0 0.0
    %952 = vmatprep.subr.mxu0 0.0
    %953 = vmatpush1.msra.mxu0 0.0
    %954 = vmatprep.subr.mxu0 0.0
    %955 = vmatpush1.msra.mxu0 0.0
    %956 = vmatprep.subr.mxu0 0.0
    %957 = vmatpush1.msra.mxu0 0.0
    %958 = vmatprep.subr.mxu0 0.0
    %959 = vmatpush1.msra.mxu0 0.0
    %960 = vmatprep.subr.mxu0 0.0
    %961 = vmatpush1.msra.mxu0 0.0
    %962 = vmatprep.subr.mxu0 0.0
    %963 = vmatpush1.msra.mxu0 0.0
    %964 = vmatprep.subr.mxu0 0.0
    %965 = vmatpush1.msra.mxu0 0.0
    %966 = vmatprep.subr.mxu0 0.0
    %967 = vmatpush1.msra.mxu0 0.0
    %968 = vmatprep.subr.mxu0 0.0
    %969 = vmatpush1.msra.mxu0 0.0
    %970 = vmatprep.subr.mxu0 0.0
    %971 = vmatpush1.msra.mxu0 0.0
    %972 = vmatprep.subr.mxu0 0.0
    %973 = vmatpush1.msra.mxu0 0.0
    %974 = vmatprep.subr.mxu0 0.0
    %975 = vmatpush1.msra.mxu0 0.0
    %976 = vmatprep.subr.mxu0 0.0
    %977 = vmatpush1.msra.mxu0 0.0
    %978 = vmatprep.subr.mxu0 0.0
    %979 = vmatpush1.msra.mxu0 0.0
    %980 = vmatprep.subr.mxu0 0.0
    %981 = vmatpush1.msra.mxu0 0.0
    %982 = vmatprep.subr.mxu0 0.0
    %983 = vmatpush1.msra.mxu0 0.0
    %984 = vmatprep.subr.mxu0 0.0
    %985 = vmatpush1.msra.mxu0 0.0
    %986 = vmatprep.subr.mxu0 0.0
    %987 = vmatpush1.msra.mxu0 0.0
    %988 = vmatprep.subr.mxu0 0.0
    %989 = vmatpush1.msra.mxu0 0.0
    %990 = vmatprep.subr.mxu0 0.0
    %991 = vmatpush1.msra.mxu0 0.0
    %992 = vmatprep.subr.mxu0 0.0
    %993 = vmatpush1.msra.mxu0 0.0
    %994 = vmatprep.subr.mxu0 0.0
    %995 = vmatpush1.msra.mxu0 0.0
    %996 = vmatprep.subr.mxu0 0.0
    %997 = vmatpush1.msra.mxu0 0.0
    %998 = vmatprep.subr.mxu0 0.0
    %999 = vmatpush1.msra.mxu0 0.0
    %1000 = vmatprep.subr.mxu0 0.0
    %1001 = vmatpush1.msra.mxu0 0.0
    %1002 = vmatprep.subr.mxu0 0.0
    %1003 = vmatpush1.msra.mxu0 0.0
    %1004 = vmatprep.mubr.f32.mxu0 0.0
    %1005 = vmatmul.mubr.f32.gmra.mrb[0].mxu0 %v938
    %v1006 = vpop.f32.mrb[0].mxu0
    %v1007 = vadd.f32 0.0, %v1006
    %v1008 = vpop.f32.mrb[0].mxu0
    %1009 = vdwg.mxu0
    %v1011 = vlaneseq
    %v1012 = vshrl.u32 %v1011, 7
    %v1013 = vsub.s32 0, %v1012
    %v1014 = vrot.slane %v147, %v1013
    %v1016 = vadd.f32 %v1014, %v1007
    %s1017 = scalar_lea.vmem [#allocation7], 8
    %v1018 = vld [vmem:[%s1017] sm:$0xff]
    %v1020 = vsel %vm295, %v781, 0
    %1022 = vmatprep.subr.mxu0 0.0
    %1023 = vmatpush1.msra.mxu0 %v1018
    %1024 = vmatprep.subr.mxu0 0.0
    %1025 = vmatpush1.msra.mxu0 0.0
    %1026 = vmatprep.subr.mxu0 0.0
    %1027 = vmatpush1.msra.mxu0 0.0
    %1028 = vmatprep.subr.mxu0 0.0
    %1029 = vmatpush1.msra.mxu0 0.0
    %1030 = vmatprep.subr.mxu0 0.0
    %1031 = vmatpush1.msra.mxu0 0.0
    %1032 = vmatprep.subr.mxu0 0.0
    %1033 = vmatpush1.msra.mxu0 0.0
    %1034 = vmatprep.subr.mxu0 0.0
    %1035 = vmatpush1.msra.mxu0 0.0
    %1036 = vmatprep.subr.mxu0 0.0
    %1037 = vmatpush1.msra.mxu0 0.0
    %1038 = vmatprep.subr.mxu0 0.0
    %1039 = vmatpush1.msra.mxu0 0.0
    %1040 = vmatprep.subr.mxu0 0.0
    %1041 = vmatpush1.msra.mxu0 0.0
    %1042 = vmatprep.subr.mxu0 0.0
    %1043 = vmatpush1.msra.mxu0 0.0
    %1044 = vmatprep.subr.mxu0 0.0
    %1045 = vmatpush1.msra.mxu0 0.0
    %1046 = vmatprep.subr.mxu0 0.0
    %1047 = vmatpush1.msra.mxu0 0.0
    %1048 = vmatprep.subr.mxu0 0.0
    %1049 = vmatpush1.msra.mxu0 0.0
    %1050 = vmatprep.subr.mxu0 0.0
    %1051 = vmatpush1.msra.mxu0 0.0
    %1052 = vmatprep.subr.mxu0 0.0
    %1053 = vmatpush1.msra.mxu0 0.0
    %1054 = vmatprep.subr.mxu0 0.0
    %1055 = vmatpush1.msra.mxu0 0.0
    %1056 = vmatprep.subr.mxu0 0.0
    %1057 = vmatpush1.msra.mxu0 0.0
    %1058 = vmatprep.subr.mxu0 0.0
    %1059 = vmatpush1.msra.mxu0 0.0
    %1060 = vmatprep.subr.mxu0 0.0
    %1061 = vmatpush1.msra.mxu0 0.0
    %1062 = vmatprep.subr.mxu0 0.0
    %1063 = vmatpush1.msra.mxu0 0.0
    %1064 = vmatprep.subr.mxu0 0.0
    %1065 = vmatpush1.msra.mxu0 0.0
    %1066 = vmatprep.subr.mxu0 0.0
    %1067 = vmatpush1.msra.mxu0 0.0
    %1068 = vmatprep.subr.mxu0 0.0
    %1069 = vmatpush1.msra.mxu0 0.0
    %1070 = vmatprep.subr.mxu0 0.0
    %1071 = vmatpush1.msra.mxu0 0.0
    %1072 = vmatprep.subr.mxu0 0.0
    %1073 = vmatpush1.msra.mxu0 0.0
    %1074 = vmatprep.subr.mxu0 0.0
    %1075 = vmatpush1.msra.mxu0 0.0
    %1076 = vmatprep.subr.mxu0 0.0
    %1077 = vmatpush1.msra.mxu0 0.0
    %1078 = vmatprep.subr.mxu0 0.0
    %1079 = vmatpush1.msra.mxu0 0.0
    %1080 = vmatprep.subr.mxu0 0.0
    %1081 = vmatpush1.msra.mxu0 0.0
    %1082 = vmatprep.subr.mxu0 0.0
    %1083 = vmatpush1.msra.mxu0 0.0
    %1084 = vmatprep.subr.mxu0 0.0
    %1085 = vmatpush1.msra.mxu0 0.0
    %1086 = vmatprep.mubr.f32.mxu0 0.0
    %1087 = vmatmul.mubr.f32.gmra.mrb[0].mxu0 %v1020
    %v1088 = vpop.f32.mrb[0].mxu0
    %v1089 = vadd.f32 0.0, %v1088
    %v1090 = vpop.f32.mrb[0].mxu0
    %1091 = vdwg.mxu0
    %v1092 = vadd.f32 %v1016, %v1089
    %s1093 = scalar_lea.vmem [#allocation7], 16
    %v1094 = vld [vmem:[%s1093] sm:$0xff]
    %v1096 = vsel %vm295, %v857, 0
    %1098 = vmatprep.subr.mxu0 0.0
    %1099 = vmatpush1.msra.mxu0 %v1094
    %1100 = vmatprep.subr.mxu0 0.0
    %1101 = vmatpush1.msra.mxu0 0.0
    %1102 = vmatprep.subr.mxu0 0.0
    %1103 = vmatpush1.msra.mxu0 0.0
    %1104 = vmatprep.subr.mxu0 0.0
    %1105 = vmatpush1.msra.mxu0 0.0
    %1106 = vmatprep.subr.mxu0 0.0
    %1107 = vmatpush1.msra.mxu0 0.0
    %1108 = vmatprep.subr.mxu0 0.0
    %1109 = vmatpush1.msra.mxu0 0.0
    %1110 = vmatprep.subr.mxu0 0.0
    %1111 = vmatpush1.msra.mxu0 0.0
    %1112 = vmatprep.subr.mxu0 0.0
    %1113 = vmatpush1.msra.mxu0 0.0
    %1114 = vmatprep.subr.mxu0 0.0
    %1115 = vmatpush1.msra.mxu0 0.0
    %1116 = vmatprep.subr.mxu0 0.0
    %1117 = vmatpush1.msra.mxu0 0.0
    %1118 = vmatprep.subr.mxu0 0.0
    %1119 = vmatpush1.msra.mxu0 0.0
    %1120 = vmatprep.subr.mxu0 0.0
    %1121 = vmatpush1.msra.mxu0 0.0
    %1122 = vmatprep.subr.mxu0 0.0
    %1123 = vmatpush1.msra.mxu0 0.0
    %1124 = vmatprep.subr.mxu0 0.0
    %1125 = vmatpush1.msra.mxu0 0.0
    %1126 = vmatprep.subr.mxu0 0.0
    %1127 = vmatpush1.msra.mxu0 0.0
    %1128 = vmatprep.subr.mxu0 0.0
    %1129 = vmatpush1.msra.mxu0 0.0
    %1130 = vmatprep.subr.mxu0 0.0
    %1131 = vmatpush1.msra.mxu0 0.0
    %1132 = vmatprep.subr.mxu0 0.0
    %1133 = vmatpush1.msra.mxu0 0.0
    %1134 = vmatprep.subr.mxu0 0.0
    %1135 = vmatpush1.msra.mxu0 0.0
    %1136 = vmatprep.subr.mxu0 0.0
    %1137 = vmatpush1.msra.mxu0 0.0
    %1138 = vmatprep.subr.mxu0 0.0
    %1139 = vmatpush1.msra.mxu0 0.0
    %1140 = vmatprep.subr.mxu0 0.0
    %1141 = vmatpush1.msra.mxu0 0.0
    %1142 = vmatprep.subr.mxu0 0.0
    %1143 = vmatpush1.msra.mxu0 0.0
    %1144 = vmatprep.subr.mxu0 0.0
    %1145 = vmatpush1.msra.mxu0 0.0
    %1146 = vmatprep.subr.mxu0 0.0
    %1147 = vmatpush1.msra.mxu0 0.0
    %1148 = vmatprep.subr.mxu0 0.0
    %1149 = vmatpush1.msra.mxu0 0.0
    %1150 = vmatprep.subr.mxu0 0.0
    %1151 = vmatpush1.msra.mxu0 0.0
    %1152 = vmatprep.subr.mxu0 0.0
    %1153 = vmatpush1.msra.mxu0 0.0
    %1154 = vmatprep.subr.mxu0 0.0
    %1155 = vmatpush1.msra.mxu0 0.0
    %1156 = vmatprep.subr.mxu0 0.0
    %1157 = vmatpush1.msra.mxu0 0.0
    %1158 = vmatprep.subr.mxu0 0.0
    %1159 = vmatpush1.msra.mxu0 0.0
    %1160 = vmatprep.subr.mxu0 0.0
    %1161 = vmatpush1.msra.mxu0 0.0
    %1162 = vmatprep.mubr.f32.mxu0 0.0
    %1163 = vmatmul.mubr.f32.gmra.mrb[0].mxu0 %v1096
    %v1164 = vpop.f32.mrb[0].mxu0
    %v1165 = vadd.f32 0.0, %v1164
    %v1166 = vpop.f32.mrb[0].mxu0
    %1167 = vdwg.mxu0
    %v1168 = vadd.f32 %v1092, %v1165
    %s1169 = scalar_lea.vmem [#allocation7], 24
    %v1170 = vld [vmem:[%s1169] sm:$0xff]
    %v1172 = vsel %vm295, %v933, 0
    %1174 = vmatprep.subr.mxu0 0.0
    %1175 = vmatpush1.msra.mxu0 %v1170
    %1176 = vmatprep.subr.mxu0 0.0
    %1177 = vmatpush1.msra.mxu0 0.0
    %1178 = vmatprep.subr.mxu0 0.0
    %1179 = vmatpush1.msra.mxu0 0.0
    %1180 = vmatprep.subr.mxu0 0.0
    %1181 = vmatpush1.msra.mxu0 0.0
    %1182 = vmatprep.subr.mxu0 0.0
    %1183 = vmatpush1.msra.mxu0 0.0
    %1184 = vmatprep.subr.mxu0 0.0
    %1185 = vmatpush1.msra.mxu0 0.0
    %1186 = vmatprep.subr.mxu0 0.0
    %1187 = vmatpush1.msra.mxu0 0.0
    %1188 = vmatprep.subr.mxu0 0.0
    %1189 = vmatpush1.msra.mxu0 0.0
    %1190 = vmatprep.subr.mxu0 0.0
    %1191 = vmatpush1.msra.mxu0 0.0
    %1192 = vmatprep.subr.mxu0 0.0
    %1193 = vmatpush1.msra.mxu0 0.0
    %1194 = vmatprep.subr.mxu0 0.0
    %1195 = vmatpush1.msra.mxu0 0.0
    %1196 = vmatprep.subr.mxu0 0.0
    %1197 = vmatpush1.msra.mxu0 0.0
    %1198 = vmatprep.subr.mxu0 0.0
    %1199 = vmatpush1.msra.mxu0 0.0
    %1200 = vmatprep.subr.mxu0 0.0
    %1201 = vmatpush1.msra.mxu0 0.0
    %1202 = vmatprep.subr.mxu0 0.0
    %1203 = vmatpush1.msra.mxu0 0.0
    %1204 = vmatprep.subr.mxu0 0.0
    %1205 = vmatpush1.msra.mxu0 0.0
    %1206 = vmatprep.subr.mxu0 0.0
    %1207 = vmatpush1.msra.mxu0 0.0
    %1208 = vmatprep.subr.mxu0 0.0
    %1209 = vmatpush1.msra.mxu0 0.0
    %1210 = vmatprep.subr.mxu0 0.0
    %1211 = vmatpush1.msra.mxu0 0.0
    %1212 = vmatprep.subr.mxu0 0.0
    %1213 = vmatpush1.msra.mxu0 0.0
    %1214 = vmatprep.subr.mxu0 0.0
    %1215 = vmatpush1.msra.mxu0 0.0
    %1216 = vmatprep.subr.mxu0 0.0
    %1217 = vmatpush1.msra.mxu0 0.0
    %1218 = vmatprep.subr.mxu0 0.0
    %1219 = vmatpush1.msra.mxu0 0.0
    %1220 = vmatprep.subr.mxu0 0.0
    %1221 = vmatpush1.msra.mxu0 0.0
    %1222 = vmatprep.subr.mxu0 0.0
    %1223 = vmatpush1.msra.mxu0 0.0
    %1224 = vmatprep.subr.mxu0 0.0
    %1225 = vmatpush1.msra.mxu0 0.0
    %1226 = vmatprep.subr.mxu0 0.0
    %1227 = vmatpush1.msra.mxu0 0.0
    %1228 = vmatprep.subr.mxu0 0.0
    %1229 = vmatpush1.msra.mxu0 0.0
    %1230 = vmatprep.subr.mxu0 0.0
    %1231 = vmatpush1.msra.mxu0 0.0
    %1232 = vmatprep.subr.mxu0 0.0
    %1233 = vmatpush1.msra.mxu0 0.0
    %1234 = vmatprep.subr.mxu0 0.0
    %1235 = vmatpush1.msra.mxu0 0.0
    %1236 = vmatprep.subr.mxu0 0.0
    %1237 = vmatpush1.msra.mxu0 0.0
    %1238 = vmatprep.mubr.f32.mxu0 0.0
    %1239 = vmatmul.mubr.f32.gmra.mrb[0].mxu0 %v1172
    %v1240 = vpop.f32.mrb[0].mxu0
    %v1241 = vadd.f32 0.0, %v1240
    %v1242 = vpop.f32.mrb[0].mxu0
    %1243 = vdwg.mxu0
    %v1244 = vadd.f32 %v1168, %v1241
    %1245 = vst.msk [vmem:[#allocation8] sm:$0xff] %vm65, %v1244
    %1247 = vrot.lane.b32.xlu0 %v144, 120
    %v1248 = vpop.permute.xlu0 %1247
    %1249 = vrot.lane.b32.xlu0 %v144, 112
    %v1250 = vpop.permute.xlu0 %1249
    %1251 = vrot.lane.b32.xlu0 %v144, 104
    %v1252 = vpop.permute.xlu0 %1251
    %1253 = vrot.lane.b32.xlu0 %v144, 96
    %v1254 = vpop.permute.xlu0 %1253
    %1255 = vrot.lane.b32.xlu0 %v1248, 96
    %v1256 = vpop.permute.xlu0 %1255
    %1257 = vrot.lane.b32.xlu0 %v1250, 96
    %v1258 = vpop.permute.xlu0 %1257
    %1259 = vrot.lane.b32.xlu0 %v1252, 96
    %v1260 = vpop.permute.xlu0 %1259
    %1265 = vxpose.xlu0.b32.start [1/16] %v1254, 128
    %1266 = vxpose.xlu0.b32.cont [2/16] 0.0, 128
    %1267 = vxpose.xlu0.b32.cont [3/16] 0.0, 128
    %1268 = vxpose.xlu0.b32.cont [4/16] 0.0, 128
    %1269 = vxpose.xlu0.b32.cont [5/16] 0.0, 128
    %1270 = vxpose.xlu0.b32.cont [6/16] 0.0, 128
    %1271 = vxpose.xlu0.b32.cont [7/16] 0.0, 128
    %1272 = vxpose.xlu0.b32.cont [8/16] 0.0, 128
    %1273 = vxpose.xlu0.b32.cont [9/16] 0.0, 128
    %1274 = vxpose.xlu0.b32.cont [10/16] 0.0, 128
    %1275 = vxpose.xlu0.b32.cont [11/16] 0.0, 128
    %1276 = vxpose.xlu0.b32.cont [12/16] 0.0, 128
    %1277 = vxpose.xlu0.b32.cont [13/16] 0.0, 128
    %1278 = vxpose.xlu0.b32.cont [14/16] 0.0, 128
    %1279 = vxpose.xlu0.b32.cont [15/16] 0.0, 128
    %1280 = vxpose.xlu0.b32.end [16/16] 0.0, 128
    %v1281 = vpop.trf.xlu0
    %v1282 = vpop.trf.xlu0
    %v1283 = vpop.trf.xlu0
    %v1284 = vpop.trf.xlu0
    %v1285 = vpop.trf.xlu0
    %v1286 = vpop.trf.xlu0
    %v1287 = vpop.trf.xlu0
    %v1288 = vpop.trf.xlu0
    %v1289 = vpop.trf.xlu0
    %v1290 = vpop.trf.xlu0
    %v1291 = vpop.trf.xlu0
    %v1292 = vpop.trf.xlu0
    %v1293 = vpop.trf.xlu0
    %v1294 = vpop.trf.xlu0
    %v1295 = vpop.trf.xlu0
    %v1296 = vpop.trf.xlu0
    %1297 = vxpose.xlu0.b32.start [1/16] %v1256, 128
    %1298 = vxpose.xlu0.b32.cont [2/16] 0.0, 128
    %1299 = vxpose.xlu0.b32.cont [3/16] 0.0, 128
    %1300 = vxpose.xlu0.b32.cont [4/16] 0.0, 128
    %1301 = vxpose.xlu0.b32.cont [5/16] 0.0, 128
    %1302 = vxpose.xlu0.b32.cont [6/16] 0.0, 128
    %1303 = vxpose.xlu0.b32.cont [7/16] 0.0, 128
    %1304 = vxpose.xlu0.b32.cont [8/16] 0.0, 128
    %1305 = vxpose.xlu0.b32.cont [9/16] 0.0, 128
    %1306 = vxpose.xlu0.b32.cont [10/16] 0.0, 128
    %1307 = vxpose.xlu0.b32.cont [11/16] 0.0, 128
    %1308 = vxpose.xlu0.b32.cont [12/16] 0.0, 128
    %1309 = vxpose.xlu0.b32.cont [13/16] 0.0, 128
    %1310 = vxpose.xlu0.b32.cont [14/16] 0.0, 128
    %1311 = vxpose.xlu0.b32.cont [15/16] 0.0, 128
    %1312 = vxpose.xlu0.b32.end [16/16] 0.0, 128
    %v1313 = vpop.trf.xlu0
    %v1314 = vpop.trf.xlu0
    %v1315 = vpop.trf.xlu0
    %v1316 = vpop.trf.xlu0
    %v1317 = vpop.trf.xlu0
    %v1318 = vpop.trf.xlu0
    %v1319 = vpop.trf.xlu0
    %v1320 = vpop.trf.xlu0
    %v1321 = vpop.trf.xlu0
    %v1322 = vpop.trf.xlu0
    %v1323 = vpop.trf.xlu0
    %v1324 = vpop.trf.xlu0
    %v1325 = vpop.trf.xlu0
    %v1326 = vpop.trf.xlu0
    %v1327 = vpop.trf.xlu0
    %v1328 = vpop.trf.xlu0
    %1329 = vxpose.xlu0.b32.start [1/16] %v1258, 128
    %1330 = vxpose.xlu0.b32.cont [2/16] 0.0, 128
    %1331 = vxpose.xlu0.b32.cont [3/16] 0.0, 128
    %1332 = vxpose.xlu0.b32.cont [4/16] 0.0, 128
    %1333 = vxpose.xlu0.b32.cont [5/16] 0.0, 128
    %1334 = vxpose.xlu0.b32.cont [6/16] 0.0, 128
    %1335 = vxpose.xlu0.b32.cont [7/16] 0.0, 128
    %1336 = vxpose.xlu0.b32.cont [8/16] 0.0, 128
    %1337 = vxpose.xlu0.b32.cont [9/16] 0.0, 128
    %1338 = vxpose.xlu0.b32.cont [10/16] 0.0, 128
    %1339 = vxpose.xlu0.b32.cont [11/16] 0.0, 128
    %1340 = vxpose.xlu0.b32.cont [12/16] 0.0, 128
    %1341 = vxpose.xlu0.b32.cont [13/16] 0.0, 128
    %1342 = vxpose.xlu0.b32.cont [14/16] 0.0, 128
    %1343 = vxpose.xlu0.b32.cont [15/16] 0.0, 128
    %1344 = vxpose.xlu0.b32.end [16/16] 0.0, 128
    %v1345 = vpop.trf.xlu0
    %v1346 = vpop.trf.xlu0
    %v1347 = vpop.trf.xlu0
    %v1348 = vpop.trf.xlu0
    %v1349 = vpop.trf.xlu0
    %v1350 = vpop.trf.xlu0
    %v1351 = vpop.trf.xlu0
    %v1352 = vpop.trf.xlu0
    %v1353 = vpop.trf.xlu0
    %v1354 = vpop.trf.xlu0
    %v1355 = vpop.trf.xlu0
    %v1356 = vpop.trf.xlu0
    %v1357 = vpop.trf.xlu0
    %v1358 = vpop.trf.xlu0
    %v1359 = vpop.trf.xlu0
    %v1360 = vpop.trf.xlu0
    %1361 = vxpose.xlu0.b32.start [1/16] %v1260, 128
    %1362 = vxpose.xlu0.b32.cont [2/16] 0.0, 128
    %1363 = vxpose.xlu0.b32.cont [3/16] 0.0, 128
    %1364 = vxpose.xlu0.b32.cont [4/16] 0.0, 128
    %1365 = vxpose.xlu0.b32.cont [5/16] 0.0, 128
    %1366 = vxpose.xlu0.b32.cont [6/16] 0.0, 128
    %1367 = vxpose.xlu0.b32.cont [7/16] 0.0, 128
    %1368 = vxpose.xlu0.b32.cont [8/16] 0.0, 128
    %1369 = vxpose.xlu0.b32.cont [9/16] 0.0, 128
    %1370 = vxpose.xlu0.b32.cont [10/16] 0.0, 128
    %1371 = vxpose.xlu0.b32.cont [11/16] 0.0, 128
    %1372 = vxpose.xlu0.b32.cont [12/16] 0.0, 128
    %1373 = vxpose.xlu0.b32.cont [13/16] 0.0, 128
    %1374 = vxpose.xlu0.b32.cont [14/16] 0.0, 128
    %1375 = vxpose.xlu0.b32.cont [15/16] 0.0, 128
    %1376 = vxpose.xlu0.b32.end [16/16] 0.0, 128
    %v1377 = vpop.trf.xlu0
    %v1378 = vpop.trf.xlu0
    %v1379 = vpop.trf.xlu0
    %v1380 = vpop.trf.xlu0
    %v1381 = vpop.trf.xlu0
    %v1382 = vpop.trf.xlu0
    %v1383 = vpop.trf.xlu0
    %v1384 = vpop.trf.xlu0
    %v1385 = vpop.trf.xlu0
    %v1386 = vpop.trf.xlu0
    %v1387 = vpop.trf.xlu0
    %v1388 = vpop.trf.xlu0
    %v1389 = vpop.trf.xlu0
    %v1390 = vpop.trf.xlu0
    %v1391 = vpop.trf.xlu0
    %v1392 = vpop.trf.xlu0
    %v1393 = vsel %vm295, %v144, 0
    %1395 = vmatprep.subr.mxu0 0.0
    %1396 = vmatpush1.msra.mxu0 %v1281
    %1397 = vmatprep.subr.mxu0 0.0
    %1398 = vmatpush1.msra.mxu0 0.0
    %1399 = vmatprep.subr.mxu0 0.0
    %1400 = vmatpush1.msra.mxu0 0.0
    %1401 = vmatprep.subr.mxu0 0.0
    %1402 = vmatpush1.msra.mxu0 0.0
    %1403 = vmatprep.subr.mxu0 0.0
    %1404 = vmatpush1.msra.mxu0 0.0
    %1405 = vmatprep.subr.mxu0 0.0
    %1406 = vmatpush1.msra.mxu0 0.0
    %1407 = vmatprep.subr.mxu0 0.0
    %1408 = vmatpush1.msra.mxu0 0.0
    %1409 = vmatprep.subr.mxu0 0.0
    %1410 = vmatpush1.msra.mxu0 0.0
    %1411 = vmatprep.subr.mxu0 0.0
    %1412 = vmatpush1.msra.mxu0 0.0
    %1413 = vmatprep.subr.mxu0 0.0
    %1414 = vmatpush1.msra.mxu0 0.0
    %1415 = vmatprep.subr.mxu0 0.0
    %1416 = vmatpush1.msra.mxu0 0.0
    %1417 = vmatprep.subr.mxu0 0.0
    %1418 = vmatpush1.msra.mxu0 0.0
    %1419 = vmatprep.subr.mxu0 0.0
    %1420 = vmatpush1.msra.mxu0 0.0
    %1421 = vmatprep.subr.mxu0 0.0
    %1422 = vmatpush1.msra.mxu0 0.0
    %1423 = vmatprep.subr.mxu0 0.0
    %1424 = vmatpush1.msra.mxu0 0.0
    %1425 = vmatprep.subr.mxu0 0.0
    %1426 = vmatpush1.msra.mxu0 0.0
    %1427 = vmatprep.subr.mxu0 0.0
    %1428 = vmatpush1.msra.mxu0 0.0
    %1429 = vmatprep.subr.mxu0 0.0
    %1430 = vmatpush1.msra.mxu0 0.0
    %1431 = vmatprep.subr.mxu0 0.0
    %1432 = vmatpush1.msra.mxu0 0.0
    %1433 = vmatprep.subr.mxu0 0.0
    %1434 = vmatpush1.msra.mxu0 0.0
    %1435 = vmatprep.subr.mxu0 0.0
    %1436 = vmatpush1.msra.mxu0 0.0
    %1437 = vmatprep.subr.mxu0 0.0
    %1438 = vmatpush1.msra.mxu0 0.0
    %1439 = vmatprep.subr.mxu0 0.0
    %1440 = vmatpush1.msra.mxu0 0.0
    %1441 = vmatprep.subr.mxu0 0.0
    %1442 = vmatpush1.msra.mxu0 0.0
    %1443 = vmatprep.subr.mxu0 0.0
    %1444 = vmatpush1.msra.mxu0 0.0
    %1445 = vmatprep.subr.mxu0 0.0
    %1446 = vmatpush1.msra.mxu0 0.0
    %1447 = vmatprep.subr.mxu0 0.0
    %1448 = vmatpush1.msra.mxu0 0.0
    %1449 = vmatprep.subr.mxu0 0.0
    %1450 = vmatpush1.msra.mxu0 0.0
    %1451 = vmatprep.subr.mxu0 0.0
    %1452 = vmatpush1.msra.mxu0 0.0
    %1453 = vmatprep.subr.mxu0 0.0
    %1454 = vmatpush1.msra.mxu0 0.0
    %1455 = vmatprep.subr.mxu0 0.0
    %1456 = vmatpush1.msra.mxu0 0.0
    %1457 = vmatprep.subr.mxu0 0.0
    %1458 = vmatpush1.msra.mxu0 0.0
    %1459 = vmatprep.mubr.f32.mxu0 0.0
    %1460 = vmatmul.mubr.f32.gmra.mrb[0].mxu0 %v1393
    %v1461 = vpop.f32.mrb[0].mxu0
    %v1462 = vadd.f32 0.0, %v1461
    %v1463 = vpop.f32.mrb[0].mxu0
    %1464 = vdwg.mxu0
    %v1465 = vsel %vm295, %v1248, 0
    %1467 = vmatprep.subr.mxu0 0.0
    %1468 = vmatpush1.msra.mxu0 %v1313
    %1469 = vmatprep.subr.mxu0 0.0
    %1470 = vmatpush1.msra.mxu0 0.0
    %1471 = vmatprep.subr.mxu0 0.0
    %1472 = vmatpush1.msra.mxu0 0.0
    %1473 = vmatprep.subr.mxu0 0.0
    %1474 = vmatpush1.msra.mxu0 0.0
    %1475 = vmatprep.subr.mxu0 0.0
    %1476 = vmatpush1.msra.mxu0 0.0
    %1477 = vmatprep.subr.mxu0 0.0
    %1478 = vmatpush1.msra.mxu0 0.0
    %1479 = vmatprep.subr.mxu0 0.0
    %1480 = vmatpush1.msra.mxu0 0.0
    %1481 = vmatprep.subr.mxu0 0.0
    %1482 = vmatpush1.msra.mxu0 0.0
    %1483 = vmatprep.subr.mxu0 0.0
    %1484 = vmatpush1.msra.mxu0 0.0
    %1485 = vmatprep.subr.mxu0 0.0
    %1486 = vmatpush1.msra.mxu0 0.0
    %1487 = vmatprep.subr.mxu0 0.0
    %1488 = vmatpush1.msra.mxu0 0.0
    %1489 = vmatprep.subr.mxu0 0.0
    %1490 = vmatpush1.msra.mxu0 0.0
    %1491 = vmatprep.subr.mxu0 0.0
    %1492 = vmatpush1.msra.mxu0 0.0
    %1493 = vmatprep.subr.mxu0 0.0
    %1494 = vmatpush1.msra.mxu0 0.0
    %1495 = vmatprep.subr.mxu0 0.0
    %1496 = vmatpush1.msra.mxu0 0.0
    %1497 = vmatprep.subr.mxu0 0.0
    %1498 = vmatpush1.msra.mxu0 0.0
    %1499 = vmatprep.subr.mxu0 0.0
    %1500 = vmatpush1.msra.mxu0 0.0
    %1501 = vmatprep.subr.mxu0 0.0
    %1502 = vmatpush1.msra.mxu0 0.0
    %1503 = vmatprep.subr.mxu0 0.0
    %1504 = vmatpush1.msra.mxu0 0.0
    %1505 = vmatprep.subr.mxu0 0.0
    %1506 = vmatpush1.msra.mxu0 0.0
    %1507 = vmatprep.subr.mxu0 0.0
    %1508 = vmatpush1.msra.mxu0 0.0
    %1509 = vmatprep.subr.mxu0 0.0
    %1510 = vmatpush1.msra.mxu0 0.0
    %1511 = vmatprep.subr.mxu0 0.0
    %1512 = vmatpush1.msra.mxu0 0.0
    %1513 = vmatprep.subr.mxu0 0.0
    %1514 = vmatpush1.msra.mxu0 0.0
    %1515 = vmatprep.subr.mxu0 0.0
    %1516 = vmatpush1.msra.mxu0 0.0
    %1517 = vmatprep.subr.mxu0 0.0
    %1518 = vmatpush1.msra.mxu0 0.0
    %1519 = vmatprep.subr.mxu0 0.0
    %1520 = vmatpush1.msra.mxu0 0.0
    %1521 = vmatprep.subr.mxu0 0.0
    %1522 = vmatpush1.msra.mxu0 0.0
    %1523 = vmatprep.subr.mxu0 0.0
    %1524 = vmatpush1.msra.mxu0 0.0
    %1525 = vmatprep.subr.mxu0 0.0
    %1526 = vmatpush1.msra.mxu0 0.0
    %1527 = vmatprep.subr.mxu0 0.0
    %1528 = vmatpush1.msra.mxu0 0.0
    %1529 = vmatprep.subr.mxu0 0.0
    %1530 = vmatpush1.msra.mxu0 0.0
    %1531 = vmatprep.mubr.f32.mxu0 0.0
    %1532 = vmatmul.mubr.f32.gmra.mrb[0].mxu0 %v1465
    %v1533 = vpop.f32.mrb[0].mxu0
    %v1534 = vadd.f32 0.0, %v1533
    %v1535 = vpop.f32.mrb[0].mxu0
    %1536 = vdwg.mxu0
    %v1537 = vsel %vm295, %v1250, 0
    %1539 = vmatprep.subr.mxu0 0.0
    %1540 = vmatpush1.msra.mxu0 %v1345
    %1541 = vmatprep.subr.mxu0 0.0
    %1542 = vmatpush1.msra.mxu0 0.0
    %1543 = vmatprep.subr.mxu0 0.0
    %1544 = vmatpush1.msra.mxu0 0.0
    %1545 = vmatprep.subr.mxu0 0.0
    %1546 = vmatpush1.msra.mxu0 0.0
    %1547 = vmatprep.subr.mxu0 0.0
    %1548 = vmatpush1.msra.mxu0 0.0
    %1549 = vmatprep.subr.mxu0 0.0
    %1550 = vmatpush1.msra.mxu0 0.0
    %1551 = vmatprep.subr.mxu0 0.0
    %1552 = vmatpush1.msra.mxu0 0.0
    %1553 = vmatprep.subr.mxu0 0.0
    %1554 = vmatpush1.msra.mxu0 0.0
    %1555 = vmatprep.subr.mxu0 0.0
    %1556 = vmatpush1.msra.mxu0 0.0
    %1557 = vmatprep.subr.mxu0 0.0
    %1558 = vmatpush1.msra.mxu0 0.0
    %1559 = vmatprep.subr.mxu0 0.0
    %1560 = vmatpush1.msra.mxu0 0.0
    %1561 = vmatprep.subr.mxu0 0.0
    %1562 = vmatpush1.msra.mxu0 0.0
    %1563 = vmatprep.subr.mxu0 0.0
    %1564 = vmatpush1.msra.mxu0 0.0
    %1565 = vmatprep.subr.mxu0 0.0
    %1566 = vmatpush1.msra.mxu0 0.0
    %1567 = vmatprep.subr.mxu0 0.0
    %1568 = vmatpush1.msra.mxu0 0.0
    %1569 = vmatprep.subr.mxu0 0.0
    %1570 = vmatpush1.msra.mxu0 0.0
    %1571 = vmatprep.subr.mxu0 0.0
    %1572 = vmatpush1.msra.mxu0 0.0
    %1573 = vmatprep.subr.mxu0 0.0
    %1574 = vmatpush1.msra.mxu0 0.0
    %1575 = vmatprep.subr.mxu0 0.0
    %1576 = vmatpush1.msra.mxu0 0.0
    %1577 = vmatprep.subr.mxu0 0.0
    %1578 = vmatpush1.msra.mxu0 0.0
    %1579 = vmatprep.subr.mxu0 0.0
    %1580 = vmatpush1.msra.mxu0 0.0
    %1581 = vmatprep.subr.mxu0 0.0
    %1582 = vmatpush1.msra.mxu0 0.0
    %1583 = vmatprep.subr.mxu0 0.0
    %1584 = vmatpush1.msra.mxu0 0.0
    %1585 = vmatprep.subr.mxu0 0.0
    %1586 = vmatpush1.msra.mxu0 0.0
    %1587 = vmatprep.subr.mxu0 0.0
    %1588 = vmatpush1.msra.mxu0 0.0
    %1589 = vmatprep.subr.mxu0 0.0
    %1590 = vmatpush1.msra.mxu0 0.0
    %1591 = vmatprep.subr.mxu0 0.0
    %1592 = vmatpush1.msra.mxu0 0.0
    %1593 = vmatprep.subr.mxu0 0.0
    %1594 = vmatpush1.msra.mxu0 0.0
    %1595 = vmatprep.subr.mxu0 0.0
    %1596 = vmatpush1.msra.mxu0 0.0
    %1597 = vmatprep.subr.mxu0 0.0
    %1598 = vmatpush1.msra.mxu0 0.0
    %1599 = vmatprep.subr.mxu0 0.0
    %1600 = vmatpush1.msra.mxu0 0.0
    %1601 = vmatprep.subr.mxu0 0.0
    %1602 = vmatpush1.msra.mxu0 0.0
    %1603 = vmatprep.mubr.f32.mxu0 0.0
    %1604 = vmatmul.mubr.f32.gmra.mrb[0].mxu0 %v1537
    %v1605 = vpop.f32.mrb[0].mxu0
    %v1606 = vadd.f32 0.0, %v1605
    %v1607 = vpop.f32.mrb[0].mxu0
    %1608 = vdwg.mxu0
    %v1609 = vsel %vm295, %v1252, 0
    %1611 = vmatprep.subr.mxu0 0.0
    %1612 = vmatpush1.msra.mxu0 %v1377
    %1613 = vmatprep.subr.mxu0 0.0
    %1614 = vmatpush1.msra.mxu0 0.0
    %1615 = vmatprep.subr.mxu0 0.0
    %1616 = vmatpush1.msra.mxu0 0.0
    %1617 = vmatprep.subr.mxu0 0.0
    %1618 = vmatpush1.msra.mxu0 0.0
    %1619 = vmatprep.subr.mxu0 0.0
    %1620 = vmatpush1.msra.mxu0 0.0
    %1621 = vmatprep.subr.mxu0 0.0
    %1622 = vmatpush1.msra.mxu0 0.0
    %1623 = vmatprep.subr.mxu0 0.0
    %1624 = vmatpush1.msra.mxu0 0.0
    %1625 = vmatprep.subr.mxu0 0.0
    %1626 = vmatpush1.msra.mxu0 0.0
    %1627 = vmatprep.subr.mxu0 0.0
    %1628 = vmatpush1.msra.mxu0 0.0
    %1629 = vmatprep.subr.mxu0 0.0
    %1630 = vmatpush1.msra.mxu0 0.0
    %1631 = vmatprep.subr.mxu0 0.0
    %1632 = vmatpush1.msra.mxu0 0.0
    %1633 = vmatprep.subr.mxu0 0.0
    %1634 = vmatpush1.msra.mxu0 0.0
    %1635 = vmatprep.subr.mxu0 0.0
    %1636 = vmatpush1.msra.mxu0 0.0
    %1637 = vmatprep.subr.mxu0 0.0
    %1638 = vmatpush1.msra.mxu0 0.0
    %1639 = vmatprep.subr.mxu0 0.0
    %1640 = vmatpush1.msra.mxu0 0.0
    %1641 = vmatprep.subr.mxu0 0.0
    %1642 = vmatpush1.msra.mxu0 0.0
    %1643 = vmatprep.subr.mxu0 0.0
    %1644 = vmatpush1.msra.mxu0 0.0
    %1645 = vmatprep.subr.mxu0 0.0
    %1646 = vmatpush1.msra.mxu0 0.0
    %1647 = vmatprep.subr.mxu0 0.0
    %1648 = vmatpush1.msra.mxu0 0.0
    %1649 = vmatprep.subr.mxu0 0.0
    %1650 = vmatpush1.msra.mxu0 0.0
    %1651 = vmatprep.subr.mxu0 0.0
    %1652 = vmatpush1.msra.mxu0 0.0
    %1653 = vmatprep.subr.mxu0 0.0
    %1654 = vmatpush1.msra.mxu0 0.0
    %1655 = vmatprep.subr.mxu0 0.0
    %1656 = vmatpush1.msra.mxu0 0.0
    %1657 = vmatprep.subr.mxu0 0.0
    %1658 = vmatpush1.msra.mxu0 0.0
    %1659 = vmatprep.subr.mxu0 0.0
    %1660 = vmatpush1.msra.mxu0 0.0
    %1661 = vmatprep.subr.mxu0 0.0
    %1662 = vmatpush1.msra.mxu0 0.0
    %1663 = vmatprep.subr.mxu0 0.0
    %1664 = vmatpush1.msra.mxu0 0.0
    %1665 = vmatprep.subr.mxu0 0.0
    %1666 = vmatpush1.msra.mxu0 0.0
    %1667 = vmatprep.subr.mxu0 0.0
    %1668 = vmatpush1.msra.mxu0 0.0
    %1669 = vmatprep.subr.mxu0 0.0
    %1670 = vmatpush1.msra.mxu0 0.0
    %1671 = vmatprep.subr.mxu0 0.0
    %1672 = vmatpush1.msra.mxu0 0.0
    %1673 = vmatprep.subr.mxu0 0.0
    %1674 = vmatpush1.msra.mxu0 0.0
    %1675 = vmatprep.mubr.f32.mxu0 0.0
    %1676 = vmatmul.mubr.f32.gmra.mrb[0].mxu0 %v1609
    %v1677 = vpop.f32.mrb[0].mxu0
    %v1678 = vadd.f32 0.0, %v1677
    %v1679 = vpop.f32.mrb[0].mxu0
    %1680 = vdwg.mxu0
    %v1681 = vmul.f32 %v1462, 0.35355338
    %v1682 = vmul.f32 %v1534, 0.35355338
    %v1683 = vmul.f32 %v1606, 0.35355338
    %v1684 = vmul.f32 %v1678, 0.35355338
    %v1685 = vsel %vm295, %v1681, -inf
    %1686 = vmax.xlane.f32.xlu0 %v1685
    %v1687 = vpop.xlane.xlu0 %1686
    %v1688 = vsel %vm295, %v1682, -inf
    %1689 = vmax.xlane.f32.xlu0 %v1688
    %v1690 = vpop.xlane.xlu0 %1689
    %v1691 = vsel %vm295, %v1683, -inf
    %1692 = vmax.xlane.f32.xlu0 %v1691
    %v1693 = vpop.xlane.xlu0 %1692
    %v1694 = vsel %vm295, %v1684, -inf
    %1695 = vmax.xlane.f32.xlu0 %v1694
    %v1696 = vpop.xlane.xlu0 %1695
    %v1697 = vsub.f32 %v1681, %v1687
    %v1698 = vsub.f32 %v1682, %v1690
    %v1699 = vsub.f32 %v1683, %v1693
    %v1700 = vsub.f32 %v1684, %v1696
    %v1701 = vmul.f32 %v1697, 1.442695
    %v1702 = vpow.pop %v1701
    %v1703 = vmul.f32 %v1698, 1.442695
    %v1704 = vpow.pop %v1703
    %v1705 = vmul.f32 %v1699, 1.442695
    %v1706 = vpow.pop %v1705
    %v1707 = vmul.f32 %v1700, 1.442695
    %v1708 = vpow.pop %v1707
    %v1709 = vsel %vm295, %v1702, 0.0
    %1710 = vadd.xlane.f32.xlu0 %v1709
    %v1711 = vpop.xlane.xlu0 %1710
    %v1712 = vsel %vm295, %v1704, 0.0
    %1713 = vadd.xlane.f32.xlu0 %v1712
    %v1714 = vpop.xlane.xlu0 %1713
    %v1715 = vsel %vm295, %v1706, 0.0
    %1716 = vadd.xlane.f32.xlu0 %v1715
    %v1717 = vpop.xlane.xlu0 %1716
    %v1718 = vsel %vm295, %v1708, 0.0
    %1719 = vadd.xlane.f32.xlu0 %v1718
    %v1720 = vpop.xlane.xlu0 %1719
    %v1721 = vrcp.pop %v1711
    %v1722 = vrcp.pop %v1714
    %v1723 = vrcp.pop %v1717
    %v1724 = vrcp.pop %v1720
    %v1725 = vmul.f32 %v1702, %v1721
    %v1726 = vmul.f32 %v1704, %v1722
    %v1727 = vmul.f32 %v1706, %v1723
    %v1728 = vmul.f32 %v1708, %v1724
    %1729 = vrot.lane.b32.xlu0 %v144, 64
    %v1730 = vpop.permute.xlu0 %1729
    %v1733 = vsel %vm295, %v1725, 0
    %1735 = vmatprep.subr.mxu0 0.0
    %1736 = vmatpush1.msra.mxu0 %v1730
    %1737 = vmatprep.subr.mxu0 0.0
    %1738 = vmatpush1.msra.mxu0 0.0
    %1739 = vmatprep.subr.mxu0 0.0
    %1740 = vmatpush1.msra.mxu0 0.0
    %1741 = vmatprep.subr.mxu0 0.0
    %1742 = vmatpush1.msra.mxu0 0.0
    %1743 = vmatprep.subr.mxu0 0.0
    %1744 = vmatpush1.msra.mxu0 0.0
    %1745 = vmatprep.subr.mxu0 0.0
    %1746 = vmatpush1.msra.mxu0 0.0
    %1747 = vmatprep.subr.mxu0 0.0
    %1748 = vmatpush1.msra.mxu0 0.0
    %1749 = vmatprep.subr.mxu0 0.0
    %1750 = vmatpush1.msra.mxu0 0.0
    %1751 = vmatprep.subr.mxu0 0.0
    %1752 = vmatpush1.msra.mxu0 0.0
    %1753 = vmatprep.subr.mxu0 0.0
    %1754 = vmatpush1.msra.mxu0 0.0
    %1755 = vmatprep.subr.mxu0 0.0
    %1756 = vmatpush1.msra.mxu0 0.0
    %1757 = vmatprep.subr.mxu0 0.0
    %1758 = vmatpush1.msra.mxu0 0.0
    %1759 = vmatprep.subr.mxu0 0.0
    %1760 = vmatpush1.msra.mxu0 0.0
    %1761 = vmatprep.subr.mxu0 0.0
    %1762 = vmatpush1.msra.mxu0 0.0
    %1763 = vmatprep.subr.mxu0 0.0
    %1764 = vmatpush1.msra.mxu0 0.0
    %1765 = vmatprep.subr.mxu0 0.0
    %1766 = vmatpush1.msra.mxu0 0.0
    %1767 = vmatprep.subr.mxu0 0.0
    %1768 = vmatpush1.msra.mxu0 0.0
    %1769 = vmatprep.subr.mxu0 0.0
    %1770 = vmatpush1.msra.mxu0 0.0
    %1771 = vmatprep.subr.mxu0 0.0
    %1772 = vmatpush1.msra.mxu0 0.0
    %1773 = vmatprep.subr.mxu0 0.0
    %1774 = vmatpush1.msra.mxu0 0.0
    %1775 = vmatprep.subr.mxu0 0.0
    %1776 = vmatpush1.msra.mxu0 0.0
    %1777 = vmatprep.subr.mxu0 0.0
    %1778 = vmatpush1.msra.mxu0 0.0
    %1779 = vmatprep.subr.mxu0 0.0
    %1780 = vmatpush1.msra.mxu0 0.0
    %1781 = vmatprep.subr.mxu0 0.0
    %1782 = vmatpush1.msra.mxu0 0.0
    %1783 = vmatprep.subr.mxu0 0.0
    %1784 = vmatpush1.msra.mxu0 0.0
    %1785 = vmatprep.subr.mxu0 0.0
    %1786 = vmatpush1.msra.mxu0 0.0
    %1787 = vmatprep.subr.mxu0 0.0
    %1788 = vmatpush1.msra.mxu0 0.0
    %1789 = vmatprep.subr.mxu0 0.0
    %1790 = vmatpush1.msra.mxu0 0.0
    %1791 = vmatprep.subr.mxu0 0.0
    %1792 = vmatpush1.msra.mxu0 0.0
    %1793 = vmatprep.subr.mxu0 0.0
    %1794 = vmatpush1.msra.mxu0 0.0
    %1795 = vmatprep.subr.mxu0 0.0
    %1796 = vmatpush1.msra.mxu0 0.0
    %1797 = vmatprep.subr.mxu0 0.0
    %1798 = vmatpush1.msra.mxu0 0.0
    %1799 = vmatprep.mubr.f32.mxu0 0.0
    %1800 = vmatmul.mubr.f32.gmra.mrb[0].mxu0 %v1733
    %v1801 = vpop.f32.mrb[0].mxu0
    %v1802 = vadd.f32 0.0, %v1801
    %v1803 = vpop.f32.mrb[0].mxu0
    %1804 = vdwg.mxu0
    %1805 = vrot.lane.b32.xlu0 %v1248, 64
    %v1806 = vpop.permute.xlu0 %1805
    %v1809 = vsel %vm295, %v1726, 0
    %1811 = vmatprep.subr.mxu0 0.0
    %1812 = vmatpush1.msra.mxu0 %v1806
    %1813 = vmatprep.subr.mxu0 0.0
    %1814 = vmatpush1.msra.mxu0 0.0
    %1815 = vmatprep.subr.mxu0 0.0
    %1816 = vmatpush1.msra.mxu0 0.0
    %1817 = vmatprep.subr.mxu0 0.0
    %1818 = vmatpush1.msra.mxu0 0.0
    %1819 = vmatprep.subr.mxu0 0.0
    %1820 = vmatpush1.msra.mxu0 0.0
    %1821 = vmatprep.subr.mxu0 0.0
    %1822 = vmatpush1.msra.mxu0 0.0
    %1823 = vmatprep.subr.mxu0 0.0
    %1824 = vmatpush1.msra.mxu0 0.0
    %1825 = vmatprep.subr.mxu0 0.0
    %1826 = vmatpush1.msra.mxu0 0.0
    %1827 = vmatprep.subr.mxu0 0.0
    %1828 = vmatpush1.msra.mxu0 0.0
    %1829 = vmatprep.subr.mxu0 0.0
    %1830 = vmatpush1.msra.mxu0 0.0
    %1831 = vmatprep.subr.mxu0 0.0
    %1832 = vmatpush1.msra.mxu0 0.0
    %1833 = vmatprep.subr.mxu0 0.0
    %1834 = vmatpush1.msra.mxu0 0.0
    %1835 = vmatprep.subr.mxu0 0.0
    %1836 = vmatpush1.msra.mxu0 0.0
    %1837 = vmatprep.subr.mxu0 0.0
    %1838 = vmatpush1.msra.mxu0 0.0
    %1839 = vmatprep.subr.mxu0 0.0
    %1840 = vmatpush1.msra.mxu0 0.0
    %1841 = vmatprep.subr.mxu0 0.0
    %1842 = vmatpush1.msra.mxu0 0.0
    %1843 = vmatprep.subr.mxu0 0.0
    %1844 = vmatpush1.msra.mxu0 0.0
    %1845 = vmatprep.subr.mxu0 0.0
    %1846 = vmatpush1.msra.mxu0 0.0
    %1847 = vmatprep.subr.mxu0 0.0
    %1848 = vmatpush1.msra.mxu0 0.0
    %1849 = vmatprep.subr.mxu0 0.0
    %1850 = vmatpush1.msra.mxu0 0.0
    %1851 = vmatprep.subr.mxu0 0.0
    %1852 = vmatpush1.msra.mxu0 0.0
    %1853 = vmatprep.subr.mxu0 0.0
    %1854 = vmatpush1.msra.mxu0 0.0
    %1855 = vmatprep.subr.mxu0 0.0
    %1856 = vmatpush1.msra.mxu0 0.0
    %1857 = vmatprep.subr.mxu0 0.0
    %1858 = vmatpush1.msra.mxu0 0.0
    %1859 = vmatprep.subr.mxu0 0.0
    %1860 = vmatpush1.msra.mxu0 0.0
    %1861 = vmatprep.subr.mxu0 0.0
    %1862 = vmatpush1.msra.mxu0 0.0
    %1863 = vmatprep.subr.mxu0 0.0
    %1864 = vmatpush1.msra.mxu0 0.0
    %1865 = vmatprep.subr.mxu0 0.0
    %1866 = vmatpush1.msra.mxu0 0.0
    %1867 = vmatprep.subr.mxu0 0.0
    %1868 = vmatpush1.msra.mxu0 0.0
    %1869 = vmatprep.subr.mxu0 0.0
    %1870 = vmatpush1.msra.mxu0 0.0
    %1871 = vmatprep.subr.mxu0 0.0
    %1872 = vmatpush1.msra.mxu0 0.0
    %1873 = vmatprep.subr.mxu0 0.0
    %1874 = vmatpush1.msra.mxu0 0.0
    %1875 = vmatprep.mubr.f32.mxu0 0.0
    %1876 = vmatmul.mubr.f32.gmra.mrb[0].mxu0 %v1809
    %v1877 = vpop.f32.mrb[0].mxu0
    %v1878 = vadd.f32 0.0, %v1877
    %v1879 = vpop.f32.mrb[0].mxu0
    %1880 = vdwg.mxu0
    %1881 = vrot.lane.b32.xlu0 %v1250, 64
    %v1882 = vpop.permute.xlu0 %1881
    %v1885 = vsel %vm295, %v1727, 0
    %1887 = vmatprep.subr.mxu0 0.0
    %1888 = vmatpush1.msra.mxu0 %v1882
    %1889 = vmatprep.subr.mxu0 0.0
    %1890 = vmatpush1.msra.mxu0 0.0
    %1891 = vmatprep.subr.mxu0 0.0
    %1892 = vmatpush1.msra.mxu0 0.0
    %1893 = vmatprep.subr.mxu0 0.0
    %1894 = vmatpush1.msra.mxu0 0.0
    %1895 = vmatprep.subr.mxu0 0.0
    %1896 = vmatpush1.msra.mxu0 0.0
    %1897 = vmatprep.subr.mxu0 0.0
    %1898 = vmatpush1.msra.mxu0 0.0
    %1899 = vmatprep.subr.mxu0 0.0
    %1900 = vmatpush1.msra.mxu0 0.0
    %1901 = vmatprep.subr.mxu0 0.0
    %1902 = vmatpush1.msra.mxu0 0.0
    %1903 = vmatprep.subr.mxu0 0.0
    %1904 = vmatpush1.msra.mxu0 0.0
    %1905 = vmatprep.subr.mxu0 0.0
    %1906 = vmatpush1.msra.mxu0 0.0
    %1907 = vmatprep.subr.mxu0 0.0
    %1908 = vmatpush1.msra.mxu0 0.0
    %1909 = vmatprep.subr.mxu0 0.0
    %1910 = vmatpush1.msra.mxu0 0.0
    %1911 = vmatprep.subr.mxu0 0.0
    %1912 = vmatpush1.msra.mxu0 0.0
    %1913 = vmatprep.subr.mxu0 0.0
    %1914 = vmatpush1.msra.mxu0 0.0
    %1915 = vmatprep.subr.mxu0 0.0
    %1916 = vmatpush1.msra.mxu0 0.0
    %1917 = vmatprep.subr.mxu0 0.0
    %1918 = vmatpush1.msra.mxu0 0.0
    %1919 = vmatprep.subr.mxu0 0.0
    %1920 = vmatpush1.msra.mxu0 0.0
    %1921 = vmatprep.subr.mxu0 0.0
    %1922 = vmatpush1.msra.mxu0 0.0
    %1923 = vmatprep.subr.mxu0 0.0
    %1924 = vmatpush1.msra.mxu0 0.0
    %1925 = vmatprep.subr.mxu0 0.0
    %1926 = vmatpush1.msra.mxu0 0.0
    %1927 = vmatprep.subr.mxu0 0.0
    %1928 = vmatpush1.msra.mxu0 0.0
    %1929 = vmatprep.subr.mxu0 0.0
    %1930 = vmatpush1.msra.mxu0 0.0
    %1931 = vmatprep.subr.mxu0 0.0
    %1932 = vmatpush1.msra.mxu0 0.0
    %1933 = vmatprep.subr.mxu0 0.0
    %1934 = vmatpush1.msra.mxu0 0.0
    %1935 = vmatprep.subr.mxu0 0.0
    %1936 = vmatpush1.msra.mxu0 0.0
    %1937 = vmatprep.subr.mxu0 0.0
    %1938 = vmatpush1.msra.mxu0 0.0
    %1939 = vmatprep.subr.mxu0 0.0
    %1940 = vmatpush1.msra.mxu0 0.0
    %1941 = vmatprep.subr.mxu0 0.0
    %1942 = vmatpush1.msra.mxu0 0.0
    %1943 = vmatprep.subr.mxu0 0.0
    %1944 = vmatpush1.msra.mxu0 0.0
    %1945 = vmatprep.subr.mxu0 0.0
    %1946 = vmatpush1.msra.mxu0 0.0
    %1947 = vmatprep.subr.mxu0 0.0
    %1948 = vmatpush1.msra.mxu0 0.0
    %1949 = vmatprep.subr.mxu0 0.0
    %1950 = vmatpush1.msra.mxu0 0.0
    %1951 = vmatprep.mubr.f32.mxu0 0.0
    %1952 = vmatmul.mubr.f32.gmra.mrb[0].mxu0 %v1885
    %v1953 = vpop.f32.mrb[0].mxu0
    %v1954 = vadd.f32 0.0, %v1953
    %v1955 = vpop.f32.mrb[0].mxu0
    %1956 = vdwg.mxu0
    %1957 = vrot.lane.b32.xlu0 %v1252, 64
    %v1958 = vpop.permute.xlu0 %1957
    %v1961 = vsel %vm295, %v1728, 0
    %1963 = vmatprep.subr.mxu0 0.0
    %1964 = vmatpush1.msra.mxu0 %v1958
    %1965 = vmatprep.subr.mxu0 0.0
    %1966 = vmatpush1.msra.mxu0 0.0
    %1967 = vmatprep.subr.mxu0 0.0
    %1968 = vmatpush1.msra.mxu0 0.0
    %1969 = vmatprep.subr.mxu0 0.0
    %1970 = vmatpush1.msra.mxu0 0.0
    %1971 = vmatprep.subr.mxu0 0.0
    %1972 = vmatpush1.msra.mxu0 0.0
    %1973 = vmatprep.subr.mxu0 0.0
    %1974 = vmatpush1.msra.mxu0 0.0
    %1975 = vmatprep.subr.mxu0 0.0
    %1976 = vmatpush1.msra.mxu0 0.0
    %1977 = vmatprep.subr.mxu0 0.0
    %1978 = vmatpush1.msra.mxu0 0.0
    %1979 = vmatprep.subr.mxu0 0.0
    %1980 = vmatpush1.msra.mxu0 0.0
    %1981 = vmatprep.subr.mxu0 0.0
    %1982 = vmatpush1.msra.mxu0 0.0
    %1983 = vmatprep.subr.mxu0 0.0
    %1984 = vmatpush1.msra.mxu0 0.0
    %1985 = vmatprep.subr.mxu0 0.0
    %1986 = vmatpush1.msra.mxu0 0.0
    %1987 = vmatprep.subr.mxu0 0.0
    %1988 = vmatpush1.msra.mxu0 0.0
    %1989 = vmatprep.subr.mxu0 0.0
    %1990 = vmatpush1.msra.mxu0 0.0
    %1991 = vmatprep.subr.mxu0 0.0
    %1992 = vmatpush1.msra.mxu0 0.0
    %1993 = vmatprep.subr.mxu0 0.0
    %1994 = vmatpush1.msra.mxu0 0.0
    %1995 = vmatprep.subr.mxu0 0.0
    %1996 = vmatpush1.msra.mxu0 0.0
    %1997 = vmatprep.subr.mxu0 0.0
    %1998 = vmatpush1.msra.mxu0 0.0
    %1999 = vmatprep.subr.mxu0 0.0
    %2000 = vmatpush1.msra.mxu0 0.0
    %2001 = vmatprep.subr.mxu0 0.0
    %2002 = vmatpush1.msra.mxu0 0.0
    %2003 = vmatprep.subr.mxu0 0.0
    %2004 = vmatpush1.msra.mxu0 0.0
    %2005 = vmatprep.subr.mxu0 0.0
    %2006 = vmatpush1.msra.mxu0 0.0
    %2007 = vmatprep.subr.mxu0 0.0
    %2008 = vmatpush1.msra.mxu0 0.0
    %2009 = vmatprep.subr.mxu0 0.0
    %2010 = vmatpush1.msra.mxu0 0.0
    %2011 = vmatprep.subr.mxu0 0.0
    %2012 = vmatpush1.msra.mxu0 0.0
    %2013 = vmatprep.subr.mxu0 0.0
    %2014 = vmatpush1.msra.mxu0 0.0
    %2015 = vmatprep.subr.mxu0 0.0
    %2016 = vmatpush1.msra.mxu0 0.0
    %2017 = vmatprep.subr.mxu0 0.0
    %2018 = vmatpush1.msra.mxu0 0.0
    %2019 = vmatprep.subr.mxu0 0.0
    %2020 = vmatpush1.msra.mxu0 0.0
    %2021 = vmatprep.subr.mxu0 0.0
    %2022 = vmatpush1.msra.mxu0 0.0
    %2023 = vmatprep.subr.mxu0 0.0
    %2024 = vmatpush1.msra.mxu0 0.0
    %2025 = vmatprep.subr.mxu0 0.0
    %2026 = vmatpush1.msra.mxu0 0.0
    %2027 = vmatprep.mubr.f32.mxu0 0.0
    %2028 = vmatmul.mubr.f32.gmra.mrb[0].mxu0 %v1961
    %v2029 = vpop.f32.mrb[0].mxu0
    %v2030 = vadd.f32 0.0, %v2029
    %v2031 = vpop.f32.mrb[0].mxu0
    %2032 = vdwg.mxu0
    %v2033 = vld [vmem:[#allocation7] sm:$0xff]
    %v2035 = vsel %vm295, %v1802, 0
    %2037 = vmatprep.subr.mxu0 0.0
    %2038 = vmatpush1.msra.mxu0 %v2033
    %2039 = vmatprep.subr.mxu0 0.0
    %2040 = vmatpush1.msra.mxu0 0.0
    %2041 = vmatprep.subr.mxu0 0.0
    %2042 = vmatpush1.msra.mxu0 0.0
    %2043 = vmatprep.subr.mxu0 0.0
    %2044 = vmatpush1.msra.mxu0 0.0
    %2045 = vmatprep.subr.mxu0 0.0
    %2046 = vmatpush1.msra.mxu0 0.0
    %2047 = vmatprep.subr.mxu0 0.0
    %2048 = vmatpush1.msra.mxu0 0.0
    %2049 = vmatprep.subr.mxu0 0.0
    %2050 = vmatpush1.msra.mxu0 0.0
    %2051 = vmatprep.subr.mxu0 0.0
    %2052 = vmatpush1.msra.mxu0 0.0
    %2053 = vmatprep.subr.mxu0 0.0
    %2054 = vmatpush1.msra.mxu0 0.0
    %2055 = vmatprep.subr.mxu0 0.0
    %2056 = vmatpush1.msra.mxu0 0.0
    %2057 = vmatprep.subr.mxu0 0.0
    %2058 = vmatpush1.msra.mxu0 0.0
    %2059 = vmatprep.subr.mxu0 0.0
    %2060 = vmatpush1.msra.mxu0 0.0
    %2061 = vmatprep.subr.mxu0 0.0
    %2062 = vmatpush1.msra.mxu0 0.0
    %2063 = vmatprep.subr.mxu0 0.0
    %2064 = vmatpush1.msra.mxu0 0.0
    %2065 = vmatprep.subr.mxu0 0.0
    %2066 = vmatpush1.msra.mxu0 0.0
    %2067 = vmatprep.subr.mxu0 0.0
    %2068 = vmatpush1.msra.mxu0 0.0
    %2069 = vmatprep.subr.mxu0 0.0
    %2070 = vmatpush1.msra.mxu0 0.0
    %2071 = vmatprep.subr.mxu0 0.0
    %2072 = vmatpush1.msra.mxu0 0.0
    %2073 = vmatprep.subr.mxu0 0.0
    %2074 = vmatpush1.msra.mxu0 0.0
    %2075 = vmatprep.subr.mxu0 0.0
    %2076 = vmatpush1.msra.mxu0 0.0
    %2077 = vmatprep.subr.mxu0 0.0
    %2078 = vmatpush1.msra.mxu0 0.0
    %2079 = vmatprep.subr.mxu0 0.0
    %2080 = vmatpush1.msra.mxu0 0.0
    %2081 = vmatprep.subr.mxu0 0.0
    %2082 = vmatpush1.msra.mxu0 0.0
    %2083 = vmatprep.subr.mxu0 0.0
    %2084 = vmatpush1.msra.mxu0 0.0
    %2085 = vmatprep.subr.mxu0 0.0
    %2086 = vmatpush1.msra.mxu0 0.0
    %2087 = vmatprep.subr.mxu0 0.0
    %2088 = vmatpush1.msra.mxu0 0.0
    %2089 = vmatprep.subr.mxu0 0.0
    %2090 = vmatpush1.msra.mxu0 0.0
    %2091 = vmatprep.subr.mxu0 0.0
    %2092 = vmatpush1.msra.mxu0 0.0
    %2093 = vmatprep.subr.mxu0 0.0
    %2094 = vmatpush1.msra.mxu0 0.0
    %2095 = vmatprep.subr.mxu0 0.0
    %2096 = vmatpush1.msra.mxu0 0.0
    %2097 = vmatprep.subr.mxu0 0.0
    %2098 = vmatpush1.msra.mxu0 0.0
    %2099 = vmatprep.subr.mxu0 0.0
    %2100 = vmatpush1.msra.mxu0 0.0
    %2101 = vmatprep.mubr.f32.mxu0 0.0
    %2102 = vmatmul.mubr.f32.gmra.mrb[0].mxu0 %v2035
    %v2103 = vpop.f32.mrb[0].mxu0
    %v2104 = vadd.f32 0.0, %v2103
    %v2105 = vpop.f32.mrb[0].mxu0
    %2106 = vdwg.mxu0
    %v2107 = vadd.f32 %v1014, %v2104
    %v2108 = vld [vmem:[%s1017] sm:$0xff]
    %v2110 = vsel %vm295, %v1878, 0
    %2112 = vmatprep.subr.mxu0 0.0
    %2113 = vmatpush1.msra.mxu0 %v2108
    %2114 = vmatprep.subr.mxu0 0.0
    %2115 = vmatpush1.msra.mxu0 0.0
    %2116 = vmatprep.subr.mxu0 0.0
    %2117 = vmatpush1.msra.mxu0 0.0
    %2118 = vmatprep.subr.mxu0 0.0
    %2119 = vmatpush1.msra.mxu0 0.0
    %2120 = vmatprep.subr.mxu0 0.0
    %2121 = vmatpush1.msra.mxu0 0.0
    %2122 = vmatprep.subr.mxu0 0.0
    %2123 = vmatpush1.msra.mxu0 0.0
    %2124 = vmatprep.subr.mxu0 0.0
    %2125 = vmatpush1.msra.mxu0 0.0
    %2126 = vmatprep.subr.mxu0 0.0
    %2127 = vmatpush1.msra.mxu0 0.0
    %2128 = vmatprep.subr.mxu0 0.0
    %2129 = vmatpush1.msra.mxu0 0.0
    %2130 = vmatprep.subr.mxu0 0.0
    %2131 = vmatpush1.msra.mxu0 0.0
    %2132 = vmatprep.subr.mxu0 0.0
    %2133 = vmatpush1.msra.mxu0 0.0
    %2134 = vmatprep.subr.mxu0 0.0
    %2135 = vmatpush1.msra.mxu0 0.0
    %2136 = vmatprep.subr.mxu0 0.0
    %2137 = vmatpush1.msra.mxu0 0.0
    %2138 = vmatprep.subr.mxu0 0.0
    %2139 = vmatpush1.msra.mxu0 0.0
    %2140 = vmatprep.subr.mxu0 0.0
    %2141 = vmatpush1.msra.mxu0 0.0
    %2142 = vmatprep.subr.mxu0 0.0
    %2143 = vmatpush1.msra.mxu0 0.0
    %2144 = vmatprep.subr.mxu0 0.0
    %2145 = vmatpush1.msra.mxu0 0.0
    %2146 = vmatprep.subr.mxu0 0.0
    %2147 = vmatpush1.msra.mxu0 0.0
    %2148 = vmatprep.subr.mxu0 0.0
    %2149 = vmatpush1.msra.mxu0 0.0
    %2150 = vmatprep.subr.mxu0 0.0
    %2151 = vmatpush1.msra.mxu0 0.0
    %2152 = vmatprep.subr.mxu0 0.0
    %2153 = vmatpush1.msra.mxu0 0.0
    %2154 = vmatprep.subr.mxu0 0.0
    %2155 = vmatpush1.msra.mxu0 0.0
    %2156 = vmatprep.subr.mxu0 0.0
    %2157 = vmatpush1.msra.mxu0 0.0
    %2158 = vmatprep.subr.mxu0 0.0
    %2159 = vmatpush1.msra.mxu0 0.0
    %2160 = vmatprep.subr.mxu0 0.0
    %2161 = vmatpush1.msra.mxu0 0.0
    %2162 = vmatprep.subr.mxu0 0.0
    %2163 = vmatpush1.msra.mxu0 0.0
    %2164 = vmatprep.subr.mxu0 0.0
    %2165 = vmatpush1.msra.mxu0 0.0
    %2166 = vmatprep.subr.mxu0 0.0
    %2167 = vmatpush1.msra.mxu0 0.0
    %2168 = vmatprep.subr.mxu0 0.0
    %2169 = vmatpush1.msra.mxu0 0.0
    %2170 = vmatprep.subr.mxu0 0.0
    %2171 = vmatpush1.msra.mxu0 0.0
    %2172 = vmatprep.subr.mxu0 0.0
    %2173 = vmatpush1.msra.mxu0 0.0
    %2174 = vmatprep.subr.mxu0 0.0
    %2175 = vmatpush1.msra.mxu0 0.0
    %2176 = vmatprep.mubr.f32.mxu0 0.0
    %2177 = vmatmul.mubr.f32.gmra.mrb[0].mxu0 %v2110
    %v2178 = vpop.f32.mrb[0].mxu0
    %v2179 = vadd.f32 0.0, %v2178
    %v2180 = vpop.f32.mrb[0].mxu0
    %2181 = vdwg.mxu0
    %v2182 = vadd.f32 %v2107, %v2179
    %v2183 = vld [vmem:[%s1093] sm:$0xff]
    %v2185 = vsel %vm295, %v1954, 0
    %2187 = vmatprep.subr.mxu0 0.0
    %2188 = vmatpush1.msra.mxu0 %v2183
    %2189 = vmatprep.subr.mxu0 0.0
    %2190 = vmatpush1.msra.mxu0 0.0
    %2191 = vmatprep.subr.mxu0 0.0
    %2192 = vmatpush1.msra.mxu0 0.0
    %2193 = vmatprep.subr.mxu0 0.0
    %2194 = vmatpush1.msra.mxu0 0.0
    %2195 = vmatprep.subr.mxu0 0.0
    %2196 = vmatpush1.msra.mxu0 0.0
    %2197 = vmatprep.subr.mxu0 0.0
    %2198 = vmatpush1.msra.mxu0 0.0
    %2199 = vmatprep.subr.mxu0 0.0
    %2200 = vmatpush1.msra.mxu0 0.0
    %2201 = vmatprep.subr.mxu0 0.0
    %2202 = vmatpush1.msra.mxu0 0.0
    %2203 = vmatprep.subr.mxu0 0.0
    %2204 = vmatpush1.msra.mxu0 0.0
    %2205 = vmatprep.subr.mxu0 0.0
    %2206 = vmatpush1.msra.mxu0 0.0
    %2207 = vmatprep.subr.mxu0 0.0
    %2208 = vmatpush1.msra.mxu0 0.0
    %2209 = vmatprep.subr.mxu0 0.0
    %2210 = vmatpush1.msra.mxu0 0.0
    %2211 = vmatprep.subr.mxu0 0.0
    %2212 = vmatpush1.msra.mxu0 0.0
    %2213 = vmatprep.subr.mxu0 0.0
    %2214 = vmatpush1.msra.mxu0 0.0
    %2215 = vmatprep.subr.mxu0 0.0
    %2216 = vmatpush1.msra.mxu0 0.0
    %2217 = vmatprep.subr.mxu0 0.0
    %2218 = vmatpush1.msra.mxu0 0.0
    %2219 = vmatprep.subr.mxu0 0.0
    %2220 = vmatpush1.msra.mxu0 0.0
    %2221 = vmatprep.subr.mxu0 0.0
    %2222 = vmatpush1.msra.mxu0 0.0
    %2223 = vmatprep.subr.mxu0 0.0
    %2224 = vmatpush1.msra.mxu0 0.0
    %2225 = vmatprep.subr.mxu0 0.0
    %2226 = vmatpush1.msra.mxu0 0.0
    %2227 = vmatprep.subr.mxu0 0.0
    %2228 = vmatpush1.msra.mxu0 0.0
    %2229 = vmatprep.subr.mxu0 0.0
    %2230 = vmatpush1.msra.mxu0 0.0
    %2231 = vmatprep.subr.mxu0 0.0
    %2232 = vmatpush1.msra.mxu0 0.0
    %2233 = vmatprep.subr.mxu0 0.0
    %2234 = vmatpush1.msra.mxu0 0.0
    %2235 = vmatprep.subr.mxu0 0.0
    %2236 = vmatpush1.msra.mxu0 0.0
    %2237 = vmatprep.subr.mxu0 0.0
    %2238 = vmatpush1.msra.mxu0 0.0
    %2239 = vmatprep.subr.mxu0 0.0
    %2240 = vmatpush1.msra.mxu0 0.0
    %2241 = vmatprep.subr.mxu0 0.0
    %2242 = vmatpush1.msra.mxu0 0.0
    %2243 = vmatprep.subr.mxu0 0.0
    %2244 = vmatpush1.msra.mxu0 0.0
    %2245 = vmatprep.subr.mxu0 0.0
    %2246 = vmatpush1.msra.mxu0 0.0
    %2247 = vmatprep.subr.mxu0 0.0
    %2248 = vmatpush1.msra.mxu0 0.0
    %2249 = vmatprep.subr.mxu0 0.0
    %2250 = vmatpush1.msra.mxu0 0.0
    %2251 = vmatprep.mubr.f32.mxu0 0.0
    %2252 = vmatmul.mubr.f32.gmra.mrb[0].mxu0 %v2185
    %v2253 = vpop.f32.mrb[0].mxu0
    %v2254 = vadd.f32 0.0, %v2253
    %v2255 = vpop.f32.mrb[0].mxu0
    %2256 = vdwg.mxu0
    %v2257 = vadd.f32 %v2182, %v2254
    %v2258 = vld [vmem:[%s1169] sm:$0xff]
    %v2260 = vsel %vm295, %v2030, 0
    %2262 = vmatprep.subr.mxu0 0.0
    %2263 = vmatpush1.msra.mxu0 %v2258
    %2264 = vmatprep.subr.mxu0 0.0
    %2265 = vmatpush1.msra.mxu0 0.0
    %2266 = vmatprep.subr.mxu0 0.0
    %2267 = vmatpush1.msra.mxu0 0.0
    %2268 = vmatprep.subr.mxu0 0.0
    %2269 = vmatpush1.msra.mxu0 0.0
    %2270 = vmatprep.subr.mxu0 0.0
    %2271 = vmatpush1.msra.mxu0 0.0
    %2272 = vmatprep.subr.mxu0 0.0
    %2273 = vmatpush1.msra.mxu0 0.0
    %2274 = vmatprep.subr.mxu0 0.0
    %2275 = vmatpush1.msra.mxu0 0.0
    %2276 = vmatprep.subr.mxu0 0.0
    %2277 = vmatpush1.msra.mxu0 0.0
    %2278 = vmatprep.subr.mxu0 0.0
    %2279 = vmatpush1.msra.mxu0 0.0
    %2280 = vmatprep.subr.mxu0 0.0
    %2281 = vmatpush1.msra.mxu0 0.0
    %2282 = vmatprep.subr.mxu0 0.0
    %2283 = vmatpush1.msra.mxu0 0.0
    %2284 = vmatprep.subr.mxu0 0.0
    %2285 = vmatpush1.msra.mxu0 0.0
    %2286 = vmatprep.subr.mxu0 0.0
    %2287 = vmatpush1.msra.mxu0 0.0
    %2288 = vmatprep.subr.mxu0 0.0
    %2289 = vmatpush1.msra.mxu0 0.0
    %2290 = vmatprep.subr.mxu0 0.0
    %2291 = vmatpush1.msra.mxu0 0.0
    %2292 = vmatprep.subr.mxu0 0.0
    %2293 = vmatpush1.msra.mxu0 0.0
    %2294 = vmatprep.subr.mxu0 0.0
    %2295 = vmatpush1.msra.mxu0 0.0
    %2296 = vmatprep.subr.mxu0 0.0
    %2297 = vmatpush1.msra.mxu0 0.0
    %2298 = vmatprep.subr.mxu0 0.0
    %2299 = vmatpush1.msra.mxu0 0.0
    %2300 = vmatprep.subr.mxu0 0.0
    %2301 = vmatpush1.msra.mxu0 0.0
    %2302 = vmatprep.subr.mxu0 0.0
    %2303 = vmatpush1.msra.mxu0 0.0
    %2304 = vmatprep.subr.mxu0 0.0
    %2305 = vmatpush1.msra.mxu0 0.0
    %2306 = vmatprep.subr.mxu0 0.0
    %2307 = vmatpush1.msra.mxu0 0.0
    %2308 = vmatprep.subr.mxu0 0.0
    %2309 = vmatpush1.msra.mxu0 0.0
    %2310 = vmatprep.subr.mxu0 0.0
    %2311 = vmatpush1.msra.mxu0 0.0
    %2312 = vmatprep.subr.mxu0 0.0
    %2313 = vmatpush1.msra.mxu0 0.0
    %2314 = vmatprep.subr.mxu0 0.0
    %2315 = vmatpush1.msra.mxu0 0.0
    %2316 = vmatprep.subr.mxu0 0.0
    %2317 = vmatpush1.msra.mxu0 0.0
    %2318 = vmatprep.subr.mxu0 0.0
    %2319 = vmatpush1.msra.mxu0 0.0
    %2320 = vmatprep.subr.mxu0 0.0
    %2321 = vmatpush1.msra.mxu0 0.0
    %2322 = vmatprep.subr.mxu0 0.0
    %2323 = vmatpush1.msra.mxu0 0.0
    %2324 = vmatprep.subr.mxu0 0.0
    %2325 = vmatpush1.msra.mxu0 0.0
    %2326 = vmatprep.mubr.f32.mxu0 0.0
    %2327 = vmatmul.mubr.f32.gmra.mrb[0].mxu0 %v2260
    %v2328 = vpop.f32.mrb[0].mxu0
    %v2329 = vadd.f32 0.0, %v2328
    %v2330 = vpop.f32.mrb[0].mxu0
    %2331 = vdwg.mxu0
    %v2332 = vadd.f32 %v2257, %v2329
    %s2333 = scalar_lea.vmem [#allocation8], 8
    %2334 = vst.msk [vmem:[%s2333] sm:$0xff] %vm65, %v2332
    // Predicated region
    $region30: #{tpu_custom_call.1} parent=1 // pred_check
      _
    $region31: #{tpu_custom_call.1} parent=1 // pred_check_branch
      %2336 = sbr.rel (0) target = $region33
    $region32: #{tpu_custom_call.1} parent=1 // pred_region
      %s2338 = ssub.s32 256, 256
      %2339 = vsyncadd [#allocation4], %s2338
      %s2340 = sshll.u32 [#allocation8], 4
      %s2341 = int_to_ptr.vmem [resolvable:$true] %s2340
      %2346 = dma.vmem_to_hbm [thread:$0]  %s2341, 256, %s4, [#allocation4], 128, 128, 8
    $region33: #{tpu_custom_call.1} parent=1 // pred_fallthru
      _
    // Predicated region
    $region34: #{tpu_custom_call.1} parent=1 // pred_check
      _
    $region35: #{tpu_custom_call.1} parent=1 // pred_check_branch
      %2348 = sbr.rel (0) target = $region37
    $region36: #{tpu_custom_call.1} parent=1 // pred_region
      %2349 = dma.done [#allocation4], 256
    $region37: #{tpu_custom_call.1} parent=1 // pred_fallthru
      _
    %2350 = vsyncpa [#allocation3], 1
    %2351 = vsyncpa [#allocation6], 1
    %2352 = vsyncpa [#allocation4], 1

</llo_original>
